<compile_context>
chip_gen: v7x
topology: tpu7x:2x2x1
jax: 0.10.0
libtpu: 0.0.40
codegen_flags: <defaults>
</compile_context>

<pallas_src>
import math

import jax
import jax.numpy as jnp
from jax.experimental import pallas as pl
from jax.experimental.pallas import tpu as pltpu

# ----------------------------- model config ---------------------------------
B = 2            # batch
T = 64           # input sequence length
INPUT_DIM = 16   # input feature dim
LAYER_DIM = 32
MID_DIM = 24
EMB_DIM = 16
EXPANSION = 3
EXP_DIM = LAYER_DIM * EXPANSION          # 96
NEG_SLOPE = 0.01                         # nn.LeakyReLU default
BN_SCALE = 1.0 / math.sqrt(1.0 + 1e-5)   # eval-mode BN, running stats (0, 1)
POOL_EPS = 1e-9

# (kernel_size, dilation, in_ch, conv_out_ch, block_out_ch) per TDNN block
BLOCK_CFG = [
    (5, 1, INPUT_DIM, LAYER_DIM, MID_DIM),
    (3, 2, MID_DIM,   LAYER_DIM, MID_DIM),
    (3, 3, MID_DIM,   LAYER_DIM, MID_DIM),
    (3, 4, MID_DIM,   LAYER_DIM, LAYER_DIM),
]

# --------------------------- parameter slab layouts ---------------------------
SLAB_COLS = 128
_ROW_ALIGN = 16   # bf16 sublane tile is (16, 128); keep every matrix 16-aligned

# weight-slab entries (matrices only, bf16), in order:
#   per block: conv_W (K*Cin, 32) im2col layout, lin_W (32, cout)
#   then expand_W (32, 96), emb_W (192, 16) lane-padded to 128.
# (rows, real_cols, kernel_slice_cols)
def _w_shapes():
    shapes = []
    for (k, _d, cin, cmid, cout) in BLOCK_CFG:
        shapes.append((k * cin, cmid, cmid))
        shapes.append((cmid, cout, cout))
    shapes.append((LAYER_DIM, EXP_DIM, EXP_DIM))
    shapes.append((2 * EXP_DIM, EMB_DIM, SLAB_COLS))   # emb: sliced at 128 lanes
    return shapes


def _w_layout(shapes):
    layout, r = [], 0
    for (nr, _nc, nc_slice) in shapes:
        layout.append((r, nr, nc_slice))
        r += -(-nr // _ROW_ALIGN) * _ROW_ALIGN
    return layout, -(-r // _ROW_ALIGN) * _ROW_ALIGN


W_SHAPES = _w_shapes()
W_LAYOUT, W_ROWS = _w_layout(W_SHAPES)      # W_ROWS = 672

# bias slab (f32): one row per bias, same ordering as the weight slab.
BIAS_WIDTHS = []
for (_k, _d, _cin, _cmid, _cout) in BLOCK_CFG:
    BIAS_WIDTHS += [_cmid, _cout]
BIAS_WIDTHS += [EXP_DIM, EMB_DIM]
NUM_BIAS = len(BIAS_WIDTHS)                 # 10
BIAS_ROWS = 16                              # padded


# ----------------------------- kernel helpers --------------------------------
def _lrelu(x):
    return jnp.where(x > 0, x, NEG_SLOPE * x)


# ------------------------------- the kernel ----------------------------------
def xvec_kernel(x_ref, w_ref, b_ref, out_ref):
    def w(i):
        r0, nr, nc = W_LAYOUT[i]
        return w_ref[r0:r0 + nr, :nc]               # bf16, static slice

    def bias(i, nc):
        return b_ref[i:i + 1, :nc]                  # f32 (1, nc)

    # Both batch elements stacked on the M axis: rows [0:t_cur)=b0, [t_cur:2*t_cur)=b1.
    h = x_ref[...].astype(jnp.bfloat16)             # (2*T, INPUT_DIM)
    t_cur = T

    # --- 4 TDNN blocks: dilated conv (im2col, one dot) + lrelu + 1x1 + lrelu ---
    for bi, (K, dil, _cin, cmid, cout) in enumerate(BLOCK_CFG):
        wc, wl = w(2 * bi), w(2 * bi + 1)
        bc, bl = bias(2 * bi, cmid), bias(2 * bi + 1, cout)

        t_out = t_cur - (K - 1) * dil
        # Batch-stacked im2col -> a single (2*t_out, K*Cin) matrix (bf16).
        cols0 = jnp.concatenate(
            [h[k * dil:k * dil + t_out, :] for k in range(K)], axis=1)
        cols1 = jnp.concatenate(
            [h[t_cur + k * dil:t_cur + k * dil + t_out, :] for k in range(K)],
            axis=1)
        cols = jnp.concatenate([cols0, cols1], axis=0)

        y = jnp.dot(cols, wc, preferred_element_type=jnp.float32) + bc
        y = _lrelu(y).astype(jnp.bfloat16)          # BN folded into wc/bc
        z = jnp.dot(y, wl, preferred_element_type=jnp.float32) + bl
        h = _lrelu(z).astype(jnp.bfloat16)          # BN folded into wl/bl
        t_cur = t_out

    # --- expand_linear (1x1 conv) + lrelu (+ folded BN); keep f32 for pooling ---
    e = jnp.dot(h, w(8), preferred_element_type=jnp.float32) + bias(8, EXP_DIM)
    e = _lrelu(e)                                   # (2*t_cur, EXP_DIM) f32

    # --- mean/std pooling over time, per batch element (static row slices) ---
    e0, e1 = e[:t_cur, :], e[t_cur:, :]
    m0 = jnp.mean(e0, axis=0, keepdims=True)
    m1 = jnp.mean(e1, axis=0, keepdims=True)
    d0, d1 = e0 - m0, e1 - m1
    s0 = jnp.sqrt(jnp.mean(d0 * d0, axis=0, keepdims=True) + POOL_EPS)
    s1 = jnp.sqrt(jnp.mean(d1 * d1, axis=0, keepdims=True) + POOL_EPS)

    ms = jnp.concatenate(
        [jnp.concatenate([m0, s0], axis=1),
         jnp.concatenate([m1, s1], axis=1)], axis=0)        # (B, 2*EXP_DIM)

    # --- embedding Linear on cat([m, s]); weight zero-padded to 128 lanes so the
    # result is a lane-dense (B, 128) tile -> one unmasked full-width store.
    emb = (jnp.dot(ms.astype(jnp.bfloat16), w(9),
                   preferred_element_type=jnp.float32) + bias(9, SLAB_COLS))
    out_ref[...] = emb.astype(out_ref.dtype)        # lanes >= EMB_DIM are zero


# ------------------------------- wrapper --------------------------------------
@jax.jit
def xvec_forward(x_nct, w_slab, b_slab):
    """x_nct: (B, INPUT_DIM, T) float32 (PyTorch NCT). Returns (B, EMB_DIM)."""
    x2d = (jnp.transpose(x_nct, (0, 2, 1))
           .astype(jnp.float32)
           .reshape(B * T, INPUT_DIM))              # batch-stacked (2*T, C)

    out = pl.pallas_call(
        xvec_kernel,
        out_shape=jax.ShapeDtypeStruct((B, SLAB_COLS), jnp.float32),
        grid=(1,),                                  # single step: whole batch at once
        in_specs=[
            pl.BlockSpec((B * T, INPUT_DIM), lambda i: (0, 0)),
            pl.BlockSpec((W_ROWS, SLAB_COLS), lambda i: (0, 0)),
            pl.BlockSpec((BIAS_ROWS, SLAB_COLS), lambda i: (0, 0)),
        ],
        out_specs=pl.BlockSpec((B, SLAB_COLS), lambda i: (0, 0)),
        compiler_params=pltpu.CompilerParams(
            dimension_semantics=("arbitrary",)),
    )(x2d, w_slab, b_slab)
    return out[:, :EMB_DIM]


# --------------------------- parameter construction ---------------------------
def _kaiming_normal(key, shape, fan_in, a=0.01):
    gain = math.sqrt(2.0 / (1.0 + a * a))
    std = gain / math.sqrt(fan_in)
    return std * jax.random.normal(key, shape, jnp.float32)


def _bias_uniform(key, shape, fan_in):
    bound = 1.0 / math.sqrt(fan_in)
    return jax.random.uniform(key, shape, jnp.float32, -bound, bound)


def make_params(key):
    """Build all params (eval-mode BN pre-folded, conv weights in im2col layout)."""
    keys = iter(jax.random.split(key, 20))
    s = BN_SCALE
    ws, bs = [], []
    for (k, _d, cin, cmid, cout) in BLOCK_CFG:
        # dilated conv as (K*Cin, Cmid) im2col matrix; BN folded in.
        ws.append(_kaiming_normal(next(keys), (k * cin, cmid), cin * k) * s)
        bs.append(_bias_uniform(next(keys), (1, cmid), cin * k) * s)
        # 1x1 conv; BN folded in.
        ws.append(_kaiming_normal(next(keys), (cmid, cout), cmid) * s)
        bs.append(_bias_uniform(next(keys), (1, cout), cmid) * s)

    # expand_linear (1x1 conv) with its BN folded in.
    ws.append(_kaiming_normal(next(keys), (LAYER_DIM, EXP_DIM), LAYER_DIM) * s)
    bs.append(_bias_uniform(next(keys), (1, EXP_DIM), LAYER_DIM) * s)

    # embedding Linear(2*EXP_DIM -> EMB_DIM): rows 0:EXP_DIM act on the mean
    # half of cat([m, s]), rows EXP_DIM: on the std half.
    fan_in = 2 * EXP_DIM
    ws.append(_kaiming_normal(next(keys), (2 * EXP_DIM, EMB_DIM), fan_in))
    bs.append(_bias_uniform(next(keys), (1, EMB_DIM), fan_in))
    return ws, bs


def pack_w_slab(ws):
    """Pack all weight matrices into one lane-aligned (W_ROWS, 128) bf16 slab."""
    slab = jnp.zeros((W_ROWS, SLAB_COLS), jnp.float32)
    for a, (r0, nr, _nc_slice) in zip(ws, W_LAYOUT):
        assert a.shape[0] == nr
        slab = slab.at[r0:r0 + nr, :a.shape[1]].set(a)
    return slab.astype(jnp.bfloat16)


def pack_b_slab(bs):
    """Pack the 10 bias rows into one (BIAS_ROWS, 128) f32 slab."""
    slab = jnp.zeros((BIAS_ROWS, SLAB_COLS), jnp.float32)
    for i, a in enumerate(bs):
        slab = slab.at[i, :a.shape[1]].set(a[0])
    return slab


# ----------------------------------- main -------------------------------------
if __name__ == "__main__":
    key = jax.random.PRNGKey(0)
    k_x, k_p = jax.random.split(key)

    x = jax.random.normal(k_x, (B, INPUT_DIM, T), jnp.float32)   # NCT input
    ws, bs = make_params(k_p)
    w_slab = pack_w_slab(ws)
    b_slab = pack_b_slab(bs)

    out = xvec_forward(x, w_slab, b_slab)
    jax.block_until_ready(out)
    assert out.shape == (B, EMB_DIM)
    assert bool(jnp.all(jnp.isfinite(out)))
    print("KERNEL_OK")
</pallas_src>

<mosaic_0001>
module attributes {stable_mosaic.version = 11 : i64} {
  func.func @xvec_kernel(%arg0: i32, %arg1: memref<128x16xf32, #tpu.memory_space<vmem>>, %arg2: memref<672x128xbf16, #tpu.memory_space<vmem>>, %arg3: memref<16x128xf32, #tpu.memory_space<vmem>>, %arg4: memref<2x128xf32, #tpu.memory_space<vmem>>) attributes {dimension_semantics = [#tpu.dimension_semantics<arbitrary>], iteration_bounds = array<i64: 1>, scalar_prefetch = 0 : i64, scratch_operands = 0 : i64, tpu.core_type = #tpu.core_type<tc>, window_params = [{pipeline_mode = #tpu.pipeline_mode<synchronous>, transform_indices = @transform_0, window_bounds = array<i64: 128, 16>}, {pipeline_mode = #tpu.pipeline_mode<synchronous>, transform_indices = @transform_1, window_bounds = array<i64: 672, 128>}, {pipeline_mode = #tpu.pipeline_mode<synchronous>, transform_indices = @transform_2, window_bounds = array<i64: 16, 128>}, {pipeline_mode = #tpu.pipeline_mode<synchronous>, transform_indices = @transform_3, window_bounds = array<i64: 2, 128>}]} {
    %c0 = arith.constant 0 : index
    %c0_0 = arith.constant 0 : index
    %0 = vector.load %arg1[%c0, %c0_0] : memref<128x16xf32, #tpu.memory_space<vmem>>, vector<128x16xf32>
    %1 = arith.truncf %0 : vector<128x16xf32> to vector<128x16xbf16>
    %c0_1 = arith.constant 0 : index
    %c0_2 = arith.constant 0 : index
    %2 = vector.load %arg2[%c0_1, %c0_2] : memref<672x128xbf16, #tpu.memory_space<vmem>>, vector<80x32xbf16>
    %c80 = arith.constant 80 : index
    %c0_3 = arith.constant 0 : index
    %3 = vector.load %arg2[%c80, %c0_3] : memref<672x128xbf16, #tpu.memory_space<vmem>>, vector<32x24xbf16>
    %c0_4 = arith.constant 0 : index
    %c0_5 = arith.constant 0 : index
    %4 = vector.load %arg3[%c0_4, %c0_5] : memref<16x128xf32, #tpu.memory_space<vmem>>, vector<1x32xf32>
    %c1 = arith.constant 1 : index
    %c0_6 = arith.constant 0 : index
    %5 = vector.load %arg3[%c1, %c0_6] : memref<16x128xf32, #tpu.memory_space<vmem>>, vector<1x24xf32>
    %6 = vector.extract_strided_slice %1 {offsets = [0, 0], sizes = [60, 16], strides = [1, 1]} : vector<128x16xbf16> to vector<60x16xbf16>
    %7 = vector.extract_strided_slice %1 {offsets = [1, 0], sizes = [60, 16], strides = [1, 1]} : vector<128x16xbf16> to vector<60x16xbf16>
    %8 = vector.extract_strided_slice %1 {offsets = [2, 0], sizes = [60, 16], strides = [1, 1]} : vector<128x16xbf16> to vector<60x16xbf16>
    %9 = vector.extract_strided_slice %1 {offsets = [3, 0], sizes = [60, 16], strides = [1, 1]} : vector<128x16xbf16> to vector<60x16xbf16>
    %10 = vector.extract_strided_slice %1 {offsets = [4, 0], sizes = [60, 16], strides = [1, 1]} : vector<128x16xbf16> to vector<60x16xbf16>
    %11 = tpu.concatenate %6, %7, %8, %9, %10 in 1 : vector<60x16xbf16>, vector<60x16xbf16>, vector<60x16xbf16>, vector<60x16xbf16>, vector<60x16xbf16> -> vector<60x80xbf16>
    %12 = vector.extract_strided_slice %1 {offsets = [64, 0], sizes = [60, 16], strides = [1, 1]} : vector<128x16xbf16> to vector<60x16xbf16>
    %13 = vector.extract_strided_slice %1 {offsets = [65, 0], sizes = [60, 16], strides = [1, 1]} : vector<128x16xbf16> to vector<60x16xbf16>
    %14 = vector.extract_strided_slice %1 {offsets = [66, 0], sizes = [60, 16], strides = [1, 1]} : vector<128x16xbf16> to vector<60x16xbf16>
    %15 = vector.extract_strided_slice %1 {offsets = [67, 0], sizes = [60, 16], strides = [1, 1]} : vector<128x16xbf16> to vector<60x16xbf16>
    %16 = vector.extract_strided_slice %1 {offsets = [68, 0], sizes = [60, 16], strides = [1, 1]} : vector<128x16xbf16> to vector<60x16xbf16>
    %17 = tpu.concatenate %12, %13, %14, %15, %16 in 1 : vector<60x16xbf16>, vector<60x16xbf16>, vector<60x16xbf16>, vector<60x16xbf16>, vector<60x16xbf16> -> vector<60x80xbf16>
    %18 = tpu.concatenate %11, %17 in 0 : vector<60x80xbf16>, vector<60x80xbf16> -> vector<120x80xbf16>
    %cst = arith.constant dense<0.000000e+00> : vector<120x32xf32>
    %19 = tpu.matmul %18, %2, %cst {dimension_numbers = #tpu.dot_dimension_numbers<[1], [0], [0], [1], [0, 0, 1, 1], [], []>} : vector<120x80xbf16>, vector<80x32xbf16>, vector<120x32xf32> -> vector<120x32xf32>
    %20 = vector.broadcast %4 : vector<1x32xf32> to vector<120x32xf32>
    %21 = arith.addf %19, %20 : vector<120x32xf32>
    %cst_7 = arith.constant 0.000000e+00 : f32
    %22 = vector.broadcast %cst_7 : f32 to vector<120x32xf32>
    %23 = arith.cmpf ogt, %21, %22 : vector<120x32xf32>
    %cst_8 = arith.constant 0.00999999977 : f32
    %24 = vector.broadcast %cst_8 : f32 to vector<120x32xf32>
    %25 = arith.mulf %24, %21 : vector<120x32xf32>
    %26 = arith.select %23, %21, %25 : vector<120x32xi1>, vector<120x32xf32>
    %27 = arith.truncf %26 : vector<120x32xf32> to vector<120x32xbf16>
    %cst_9 = arith.constant dense<0.000000e+00> : vector<120x24xf32>
    %28 = tpu.matmul %27, %3, %cst_9 {dimension_numbers = #tpu.dot_dimension_numbers<[1], [0], [0], [1], [0, 0, 1, 1], [], []>} : vector<120x32xbf16>, vector<32x24xbf16>, vector<120x24xf32> -> vector<120x24xf32>
    %29 = vector.broadcast %5 : vector<1x24xf32> to vector<120x24xf32>
    %30 = arith.addf %28, %29 : vector<120x24xf32>
    %cst_10 = arith.constant 0.000000e+00 : f32
    %31 = vector.broadcast %cst_10 : f32 to vector<120x24xf32>
    %32 = arith.cmpf ogt, %30, %31 : vector<120x24xf32>
    %cst_11 = arith.constant 0.00999999977 : f32
    %33 = vector.broadcast %cst_11 : f32 to vector<120x24xf32>
    %34 = arith.mulf %33, %30 : vector<120x24xf32>
    %35 = arith.select %32, %30, %34 : vector<120x24xi1>, vector<120x24xf32>
    %36 = arith.truncf %35 : vector<120x24xf32> to vector<120x24xbf16>
    %c112 = arith.constant 112 : index
    %c0_12 = arith.constant 0 : index
    %37 = vector.load %arg2[%c112, %c0_12] : memref<672x128xbf16, #tpu.memory_space<vmem>>, vector<72x32xbf16>
    %c192 = arith.constant 192 : index
    %c0_13 = arith.constant 0 : index
    %38 = vector.load %arg2[%c192, %c0_13] : memref<672x128xbf16, #tpu.memory_space<vmem>>, vector<32x24xbf16>
    %c2 = arith.constant 2 : index
    %c0_14 = arith.constant 0 : index
    %39 = vector.load %arg3[%c2, %c0_14] : memref<16x128xf32, #tpu.memory_space<vmem>>, vector<1x32xf32>
    %c3 = arith.constant 3 : index
    %c0_15 = arith.constant 0 : index
    %40 = vector.load %arg3[%c3, %c0_15] : memref<16x128xf32, #tpu.memory_space<vmem>>, vector<1x24xf32>
    %41 = vector.extract_strided_slice %36 {offsets = [0, 0], sizes = [56, 24], strides = [1, 1]} : vector<120x24xbf16> to vector<56x24xbf16>
    %42 = vector.extract_strided_slice %36 {offsets = [2, 0], sizes = [56, 24], strides = [1, 1]} : vector<120x24xbf16> to vector<56x24xbf16>
    %43 = vector.extract_strided_slice %36 {offsets = [4, 0], sizes = [56, 24], strides = [1, 1]} : vector<120x24xbf16> to vector<56x24xbf16>
    %44 = tpu.concatenate %41, %42, %43 in 1 : vector<56x24xbf16>, vector<56x24xbf16>, vector<56x24xbf16> -> vector<56x72xbf16>
    %45 = vector.extract_strided_slice %36 {offsets = [60, 0], sizes = [56, 24], strides = [1, 1]} : vector<120x24xbf16> to vector<56x24xbf16>
    %46 = vector.extract_strided_slice %36 {offsets = [62, 0], sizes = [56, 24], strides = [1, 1]} : vector<120x24xbf16> to vector<56x24xbf16>
    %47 = vector.extract_strided_slice %36 {offsets = [64, 0], sizes = [56, 24], strides = [1, 1]} : vector<120x24xbf16> to vector<56x24xbf16>
    %48 = tpu.concatenate %45, %46, %47 in 1 : vector<56x24xbf16>, vector<56x24xbf16>, vector<56x24xbf16> -> vector<56x72xbf16>
    %49 = tpu.concatenate %44, %48 in 0 : vector<56x72xbf16>, vector<56x72xbf16> -> vector<112x72xbf16>
    %cst_16 = arith.constant dense<0.000000e+00> : vector<112x32xf32>
    %50 = tpu.matmul %49, %37, %cst_16 {dimension_numbers = #tpu.dot_dimension_numbers<[1], [0], [0], [1], [0, 0, 1, 1], [], []>} : vector<112x72xbf16>, vector<72x32xbf16>, vector<112x32xf32> -> vector<112x32xf32>
    %51 = vector.broadcast %39 : vector<1x32xf32> to vector<112x32xf32>
    %52 = arith.addf %50, %51 : vector<112x32xf32>
    %cst_17 = arith.constant 0.000000e+00 : f32
    %53 = vector.broadcast %cst_17 : f32 to vector<112x32xf32>
    %54 = arith.cmpf ogt, %52, %53 : vector<112x32xf32>
    %cst_18 = arith.constant 0.00999999977 : f32
    %55 = vector.broadcast %cst_18 : f32 to vector<112x32xf32>
    %56 = arith.mulf %55, %52 : vector<112x32xf32>
    %57 = arith.select %54, %52, %56 : vector<112x32xi1>, vector<112x32xf32>
    %58 = arith.truncf %57 : vector<112x32xf32> to vector<112x32xbf16>
    %cst_19 = arith.constant dense<0.000000e+00> : vector<112x24xf32>
    %59 = tpu.matmul %58, %38, %cst_19 {dimension_numbers = #tpu.dot_dimension_numbers<[1], [0], [0], [1], [0, 0, 1, 1], [], []>} : vector<112x32xbf16>, vector<32x24xbf16>, vector<112x24xf32> -> vector<112x24xf32>
    %60 = vector.broadcast %40 : vector<1x24xf32> to vector<112x24xf32>
    %61 = arith.addf %59, %60 : vector<112x24xf32>
    %cst_20 = arith.constant 0.000000e+00 : f32
    %62 = vector.broadcast %cst_20 : f32 to vector<112x24xf32>
    %63 = arith.cmpf ogt, %61, %62 : vector<112x24xf32>
    %cst_21 = arith.constant 0.00999999977 : f32
    %64 = vector.broadcast %cst_21 : f32 to vector<112x24xf32>
    %65 = arith.mulf %64, %61 : vector<112x24xf32>
    %66 = arith.select %63, %61, %65 : vector<112x24xi1>, vector<112x24xf32>
    %67 = arith.truncf %66 : vector<112x24xf32> to vector<112x24xbf16>
    %c224 = arith.constant 224 : index
    %c0_22 = arith.constant 0 : index
    %68 = vector.load %arg2[%c224, %c0_22] : memref<672x128xbf16, #tpu.memory_space<vmem>>, vector<72x32xbf16>
    %c304 = arith.constant 304 : index
    %c0_23 = arith.constant 0 : index
    %69 = vector.load %arg2[%c304, %c0_23] : memref<672x128xbf16, #tpu.memory_space<vmem>>, vector<32x24xbf16>
    %c4 = arith.constant 4 : index
    %c0_24 = arith.constant 0 : index
    %70 = vector.load %arg3[%c4, %c0_24] : memref<16x128xf32, #tpu.memory_space<vmem>>, vector<1x32xf32>
    %c5 = arith.constant 5 : index
    %c0_25 = arith.constant 0 : index
    %71 = vector.load %arg3[%c5, %c0_25] : memref<16x128xf32, #tpu.memory_space<vmem>>, vector<1x24xf32>
    %72 = vector.extract_strided_slice %67 {offsets = [0, 0], sizes = [50, 24], strides = [1, 1]} : vector<112x24xbf16> to vector<50x24xbf16>
    %73 = vector.extract_strided_slice %67 {offsets = [3, 0], sizes = [50, 24], strides = [1, 1]} : vector<112x24xbf16> to vector<50x24xbf16>
    %74 = vector.extract_strided_slice %67 {offsets = [6, 0], sizes = [50, 24], strides = [1, 1]} : vector<112x24xbf16> to vector<50x24xbf16>
    %75 = tpu.concatenate %72, %73, %74 in 1 : vector<50x24xbf16>, vector<50x24xbf16>, vector<50x24xbf16> -> vector<50x72xbf16>
    %76 = vector.extract_strided_slice %67 {offsets = [56, 0], sizes = [50, 24], strides = [1, 1]} : vector<112x24xbf16> to vector<50x24xbf16>
    %77 = vector.extract_strided_slice %67 {offsets = [59, 0], sizes = [50, 24], strides = [1, 1]} : vector<112x24xbf16> to vector<50x24xbf16>
    %78 = vector.extract_strided_slice %67 {offsets = [62, 0], sizes = [50, 24], strides = [1, 1]} : vector<112x24xbf16> to vector<50x24xbf16>
    %79 = tpu.concatenate %76, %77, %78 in 1 : vector<50x24xbf16>, vector<50x24xbf16>, vector<50x24xbf16> -> vector<50x72xbf16>
    %80 = tpu.concatenate %75, %79 in 0 : vector<50x72xbf16>, vector<50x72xbf16> -> vector<100x72xbf16>
    %cst_26 = arith.constant dense<0.000000e+00> : vector<100x32xf32>
    %81 = tpu.matmul %80, %68, %cst_26 {dimension_numbers = #tpu.dot_dimension_numbers<[1], [0], [0], [1], [0, 0, 1, 1], [], []>} : vector<100x72xbf16>, vector<72x32xbf16>, vector<100x32xf32> -> vector<100x32xf32>
    %82 = vector.broadcast %70 : vector<1x32xf32> to vector<100x32xf32>
    %83 = arith.addf %81, %82 : vector<100x32xf32>
    %cst_27 = arith.constant 0.000000e+00 : f32
    %84 = vector.broadcast %cst_27 : f32 to vector<100x32xf32>
    %85 = arith.cmpf ogt, %83, %84 : vector<100x32xf32>
    %cst_28 = arith.constant 0.00999999977 : f32
    %86 = vector.broadcast %cst_28 : f32 to vector<100x32xf32>
    %87 = arith.mulf %86, %83 : vector<100x32xf32>
    %88 = arith.select %85, %83, %87 : vector<100x32xi1>, vector<100x32xf32>
    %89 = arith.truncf %88 : vector<100x32xf32> to vector<100x32xbf16>
    %cst_29 = arith.constant dense<0.000000e+00> : vector<100x24xf32>
    %90 = tpu.matmul %89, %69, %cst_29 {dimension_numbers = #tpu.dot_dimension_numbers<[1], [0], [0], [1], [0, 0, 1, 1], [], []>} : vector<100x32xbf16>, vector<32x24xbf16>, vector<100x24xf32> -> vector<100x24xf32>
    %91 = vector.broadcast %71 : vector<1x24xf32> to vector<100x24xf32>
    %92 = arith.addf %90, %91 : vector<100x24xf32>
    %cst_30 = arith.constant 0.000000e+00 : f32
    %93 = vector.broadcast %cst_30 : f32 to vector<100x24xf32>
    %94 = arith.cmpf ogt, %92, %93 : vector<100x24xf32>
    %cst_31 = arith.constant 0.00999999977 : f32
    %95 = vector.broadcast %cst_31 : f32 to vector<100x24xf32>
    %96 = arith.mulf %95, %92 : vector<100x24xf32>
    %97 = arith.select %94, %92, %96 : vector<100x24xi1>, vector<100x24xf32>
    %98 = arith.truncf %97 : vector<100x24xf32> to vector<100x24xbf16>
    %c336 = arith.constant 336 : index
    %c0_32 = arith.constant 0 : index
    %99 = vector.load %arg2[%c336, %c0_32] : memref<672x128xbf16, #tpu.memory_space<vmem>>, vector<72x32xbf16>
    %c416 = arith.constant 416 : index
    %c0_33 = arith.constant 0 : index
    %100 = vector.load %arg2[%c416, %c0_33] : memref<672x128xbf16, #tpu.memory_space<vmem>>, vector<32x32xbf16>
    %c6 = arith.constant 6 : index
    %c0_34 = arith.constant 0 : index
    %101 = vector.load %arg3[%c6, %c0_34] : memref<16x128xf32, #tpu.memory_space<vmem>>, vector<1x32xf32>
    %c7 = arith.constant 7 : index
    %c0_35 = arith.constant 0 : index
    %102 = vector.load %arg3[%c7, %c0_35] : memref<16x128xf32, #tpu.memory_space<vmem>>, vector<1x32xf32>
    %103 = vector.extract_strided_slice %98 {offsets = [0, 0], sizes = [42, 24], strides = [1, 1]} : vector<100x24xbf16> to vector<42x24xbf16>
    %104 = vector.extract_strided_slice %98 {offsets = [4, 0], sizes = [42, 24], strides = [1, 1]} : vector<100x24xbf16> to vector<42x24xbf16>
    %105 = vector.extract_strided_slice %98 {offsets = [8, 0], sizes = [42, 24], strides = [1, 1]} : vector<100x24xbf16> to vector<42x24xbf16>
    %106 = tpu.concatenate %103, %104, %105 in 1 : vector<42x24xbf16>, vector<42x24xbf16>, vector<42x24xbf16> -> vector<42x72xbf16>
    %107 = vector.extract_strided_slice %98 {offsets = [50, 0], sizes = [42, 24], strides = [1, 1]} : vector<100x24xbf16> to vector<42x24xbf16>
    %108 = vector.extract_strided_slice %98 {offsets = [54, 0], sizes = [42, 24], strides = [1, 1]} : vector<100x24xbf16> to vector<42x24xbf16>
    %109 = vector.extract_strided_slice %98 {offsets = [58, 0], sizes = [42, 24], strides = [1, 1]} : vector<100x24xbf16> to vector<42x24xbf16>
    %110 = tpu.concatenate %107, %108, %109 in 1 : vector<42x24xbf16>, vector<42x24xbf16>, vector<42x24xbf16> -> vector<42x72xbf16>
    %111 = tpu.concatenate %106, %110 in 0 : vector<42x72xbf16>, vector<42x72xbf16> -> vector<84x72xbf16>
    %cst_36 = arith.constant dense<0.000000e+00> : vector<84x32xf32>
    %112 = tpu.matmul %111, %99, %cst_36 {dimension_numbers = #tpu.dot_dimension_numbers<[1], [0], [0], [1], [0, 0, 1, 1], [], []>} : vector<84x72xbf16>, vector<72x32xbf16>, vector<84x32xf32> -> vector<84x32xf32>
    %113 = vector.broadcast %101 : vector<1x32xf32> to vector<84x32xf32>
    %114 = arith.addf %112, %113 : vector<84x32xf32>
    %cst_37 = arith.constant 0.000000e+00 : f32
    %115 = vector.broadcast %cst_37 : f32 to vector<84x32xf32>
    %116 = arith.cmpf ogt, %114, %115 : vector<84x32xf32>
    %cst_38 = arith.constant 0.00999999977 : f32
    %117 = vector.broadcast %cst_38 : f32 to vector<84x32xf32>
    %118 = arith.mulf %117, %114 : vector<84x32xf32>
    %119 = arith.select %116, %114, %118 : vector<84x32xi1>, vector<84x32xf32>
    %120 = arith.truncf %119 : vector<84x32xf32> to vector<84x32xbf16>
    %cst_39 = arith.constant dense<0.000000e+00> : vector<84x32xf32>
    %121 = tpu.matmul %120, %100, %cst_39 {dimension_numbers = #tpu.dot_dimension_numbers<[1], [0], [0], [1], [0, 0, 1, 1], [], []>} : vector<84x32xbf16>, vector<32x32xbf16>, vector<84x32xf32> -> vector<84x32xf32>
    %122 = vector.broadcast %102 : vector<1x32xf32> to vector<84x32xf32>
    %123 = arith.addf %121, %122 : vector<84x32xf32>
    %cst_40 = arith.constant 0.000000e+00 : f32
    %124 = vector.broadcast %cst_40 : f32 to vector<84x32xf32>
    %125 = arith.cmpf ogt, %123, %124 : vector<84x32xf32>
    %cst_41 = arith.constant 0.00999999977 : f32
    %126 = vector.broadcast %cst_41 : f32 to vector<84x32xf32>
    %127 = arith.mulf %126, %123 : vector<84x32xf32>
    %128 = arith.select %125, %123, %127 : vector<84x32xi1>, vector<84x32xf32>
    %129 = arith.truncf %128 : vector<84x32xf32> to vector<84x32xbf16>
    %c448 = arith.constant 448 : index
    %c0_42 = arith.constant 0 : index
    %130 = vector.load %arg2[%c448, %c0_42] : memref<672x128xbf16, #tpu.memory_space<vmem>>, vector<32x96xbf16>
    %cst_43 = arith.constant dense<0.000000e+00> : vector<84x96xf32>
    %131 = tpu.matmul %129, %130, %cst_43 {dimension_numbers = #tpu.dot_dimension_numbers<[1], [0], [0], [1], [0, 0, 1, 1], [], []>} : vector<84x32xbf16>, vector<32x96xbf16>, vector<84x96xf32> -> vector<84x96xf32>
    %c8 = arith.constant 8 : index
    %c0_44 = arith.constant 0 : index
    %132 = vector.load %arg3[%c8, %c0_44] : memref<16x128xf32, #tpu.memory_space<vmem>>, vector<1x96xf32>
    %133 = vector.broadcast %132 : vector<1x96xf32> to vector<84x96xf32>
    %134 = arith.addf %131, %133 : vector<84x96xf32>
    %cst_45 = arith.constant 0.000000e+00 : f32
    %135 = vector.broadcast %cst_45 : f32 to vector<84x96xf32>
    %136 = arith.cmpf ogt, %134, %135 : vector<84x96xf32>
    %cst_46 = arith.constant 0.00999999977 : f32
    %137 = vector.broadcast %cst_46 : f32 to vector<84x96xf32>
    %138 = arith.mulf %137, %134 : vector<84x96xf32>
    %139 = arith.select %136, %134, %138 : vector<84x96xi1>, vector<84x96xf32>
    %140 = vector.extract_strided_slice %139 {offsets = [0, 0], sizes = [42, 96], strides = [1, 1]} : vector<84x96xf32> to vector<42x96xf32>
    %141 = vector.extract_strided_slice %139 {offsets = [42, 0], sizes = [42, 96], strides = [1, 1]} : vector<84x96xf32> to vector<42x96xf32>
    %cst_47 = arith.constant dense<0.000000e+00> : vector<96xf32>
    %142 = vector.multi_reduction <add>, %140, %cst_47 [0] : vector<42x96xf32> to vector<96xf32>
    %143 = vector.shape_cast %142 : vector<96xf32> to vector<1x96xf32>
    %cst_48 = arith.constant 4.200000e+01 : f32
    %144 = vector.broadcast %cst_48 : f32 to vector<1x96xf32>
    %145 = arith.divf %143, %144 : vector<1x96xf32>
    %cst_49 = arith.constant dense<0.000000e+00> : vector<96xf32>
    %146 = vector.multi_reduction <add>, %141, %cst_49 [0] : vector<42x96xf32> to vector<96xf32>
    %147 = vector.shape_cast %146 : vector<96xf32> to vector<1x96xf32>
    %cst_50 = arith.constant 4.200000e+01 : f32
    %148 = vector.broadcast %cst_50 : f32 to vector<1x96xf32>
    %149 = arith.divf %147, %148 : vector<1x96xf32>
    %150 = vector.broadcast %145 : vector<1x96xf32> to vector<42x96xf32>
    %151 = arith.subf %140, %150 : vector<42x96xf32>
    %152 = vector.broadcast %149 : vector<1x96xf32> to vector<42x96xf32>
    %153 = arith.subf %141, %152 : vector<42x96xf32>
    %154 = arith.mulf %151, %151 : vector<42x96xf32>
    %cst_51 = arith.constant dense<0.000000e+00> : vector<96xf32>
    %155 = vector.multi_reduction <add>, %154, %cst_51 [0] : vector<42x96xf32> to vector<96xf32>
    %156 = vector.shape_cast %155 : vector<96xf32> to vector<1x96xf32>
    %cst_52 = arith.constant 4.200000e+01 : f32
    %157 = vector.broadcast %cst_52 : f32 to vector<1x96xf32>
    %158 = arith.divf %156, %157 : vector<1x96xf32>
    %cst_53 = arith.constant 9.99999971E-10 : f32
    %159 = vector.broadcast %cst_53 : f32 to vector<1x96xf32>
    %160 = arith.addf %158, %159 : vector<1x96xf32>
    %161 = math.sqrt %160 : vector<1x96xf32>
    %162 = arith.mulf %153, %153 : vector<42x96xf32>
    %cst_54 = arith.constant dense<0.000000e+00> : vector<96xf32>
    %163 = vector.multi_reduction <add>, %162, %cst_54 [0] : vector<42x96xf32> to vector<96xf32>
    %164 = vector.shape_cast %163 : vector<96xf32> to vector<1x96xf32>
    %cst_55 = arith.constant 4.200000e+01 : f32
    %165 = vector.broadcast %cst_55 : f32 to vector<1x96xf32>
    %166 = arith.divf %164, %165 : vector<1x96xf32>
    %cst_56 = arith.constant 9.99999971E-10 : f32
    %167 = vector.broadcast %cst_56 : f32 to vector<1x96xf32>
    %168 = arith.addf %166, %167 : vector<1x96xf32>
    %169 = math.sqrt %168 : vector<1x96xf32>
    %170 = tpu.concatenate %145, %161 in 1 : vector<1x96xf32>, vector<1x96xf32> -> vector<1x192xf32>
    %171 = tpu.concatenate %149, %169 in 1 : vector<1x96xf32>, vector<1x96xf32> -> vector<1x192xf32>
    %172 = tpu.concatenate %170, %171 in 0 : vector<1x192xf32>, vector<1x192xf32> -> vector<2x192xf32>
    %173 = arith.truncf %172 : vector<2x192xf32> to vector<2x192xbf16>
    %c480 = arith.constant 480 : index
    %c0_57 = arith.constant 0 : index
    %174 = vector.load %arg2[%c480, %c0_57] : memref<672x128xbf16, #tpu.memory_space<vmem>>, vector<192x128xbf16>
    %cst_58 = arith.constant dense<0.000000e+00> : vector<2x128xf32>
    %175 = tpu.matmul %173, %174, %cst_58 {dimension_numbers = #tpu.dot_dimension_numbers<[1], [0], [0], [1], [0, 0, 1, 1], [], []>} : vector<2x192xbf16>, vector<192x128xbf16>, vector<2x128xf32> -> vector<2x128xf32>
    %c9 = arith.constant 9 : index
    %c0_59 = arith.constant 0 : index
    %176 = vector.load %arg3[%c9, %c0_59] : memref<16x128xf32, #tpu.memory_space<vmem>>, vector<1x128xf32>
    %177 = vector.broadcast %176 : vector<1x128xf32> to vector<2x128xf32>
    %178 = arith.addf %175, %177 : vector<2x128xf32>
    %c0_60 = arith.constant 0 : index
    %c0_61 = arith.constant 0 : index
    %179 = vector.load %arg4[%c0_60, %c0_61] : memref<2x128xf32, #tpu.memory_space<vmem>>, vector<2x128xf32>
    tpu.vector_store %arg4[%c0_60, %c0_61], %178 {strides = array<i32>} : memref<2x128xf32, #tpu.memory_space<vmem>>, vector<2x128xf32>,
    return
  }
  func.func @transform_0(%arg0: i32) -> (i32, i32) {
    %c0_i32 = arith.constant 0 : i32
    %c0_i32_0 = arith.constant 0 : i32
    %c0_i32_1 = arith.constant 0 : i32
    return %c0_i32, %c0_i32_0 : i32, i32
  }
  func.func @transform_1(%arg0: i32) -> (i32, i32) {
    %c0_i32 = arith.constant 0 : i32
    %c0_i32_0 = arith.constant 0 : i32
    %c0_i32_1 = arith.constant 0 : i32
    return %c0_i32, %c0_i32_0 : i32, i32
  }
  func.func @transform_2(%arg0: i32) -> (i32, i32) {
    %c0_i32 = arith.constant 0 : i32
    %c0_i32_0 = arith.constant 0 : i32
    %c0_i32_1 = arith.constant 0 : i32
    return %c0_i32, %c0_i32_0 : i32, i32
  }
  func.func @transform_3(%arg0: i32) -> (i32, i32) {
    %c0_i32 = arith.constant 0 : i32
    %c0_i32_0 = arith.constant 0 : i32
    %c0_i32_1 = arith.constant 0 : i32
    return %c0_i32, %c0_i32_0 : i32, i32
  }
}

</mosaic_0001>

<llo_original>
// kernel: xvec_forward.1
$region0: #{xvec_forward.1}
  #allocation0 [shape = 'u32[]', space=smem, size = 0x4, offset = 0x4, fixed_abs, tag = 'smem constant byte address 0x4 - core index']
  #allocation1 [shape = 'u32[144,128]{1,0:T(1,128)}', space=vmem, size = 0x12000, scoped, tag = 'internal scratch']
  %s0 = inlined_call_operand.vmem [shape: f32[128,16], index: 0, kind: input, shape index: {}]
  %s1 = inlined_call_operand.hbm [shape: bf16[672,128], index: 1, kind: input, shape index: {}]
  %s2 = inlined_call_operand.vmem [shape: f32[16,128], index: 2, kind: input, shape index: {}]
  %s3 = inlined_call_operand.hbm [shape: f32[2,128], index: 3, kind: output, shape index: {}]
  %s4 = sld [smem:[#allocation0]]
  $region26: #{xvec_forward.1} parent=0
    _
  %s6 = ssub.s32 1, %s4
  %s7 = scalar_select 0, %s6, %s4
  $region1: #{xvec_forward.1} parent=0
    #allocation2 [shape = 'u8[172032]{0}', space=vmem, size = 0x2a000, scoped, tag = 'input window, operand 1, single buffered']
    #allocation3 [shape = 's32[1]{0}', space=sflag, size = 0x4, scoped, tag = 'scoped memory for xvec_forward.1']
    #allocation4 [shape = 's32[1]{0}', space=sflag, size = 0x4, scoped, tag = 'scoped memory for xvec_forward.1']
    #allocation5 [shape = 'u8[1024]{0}', space=vmem, size = 0x400, scoped, tag = 'output window, operand 0, single buffered']
    %8 = vsyncpa [#allocation3], 0
    %9 = vsyncpa [#allocation4], 0
    // Predicated region
    $region2: #{xvec_forward.1} parent=1 // pred_check
      _
    $region3: #{xvec_forward.1} parent=1 // pred_check_branch
      %11 = sbr.rel (0) target = $region5
    $region4: #{xvec_forward.1} parent=1 // pred_region
      _
    $region5: #{xvec_forward.1} parent=1 // pred_fallthru
      _
    // Predicated region
    $region6: #{xvec_forward.1} parent=1 // pred_check
      _
    $region7: #{xvec_forward.1} parent=1 // pred_check_branch
      %13 = sbr.rel (0) target = $region9
    $region8: #{xvec_forward.1} parent=1 // pred_region
      %s15 = ssub.s32 5376, 5376
      %16 = vsyncadd [#allocation3], %s15
      %s17 = sshll.u32 [#allocation2], 4
      %s18 = int_to_ptr.vmem [resolvable:$true] %s17
      %23 = dma.hbm_to_vmem [thread:$0]  %s1, 5376, %s18, [#allocation3], 64, 64, 4
    $region9: #{xvec_forward.1} parent=1 // pred_fallthru
      _
    // Predicated region
    $region10: #{xvec_forward.1} parent=1 // pred_check
      _
    $region11: #{xvec_forward.1} parent=1 // pred_check_branch
      %25 = sbr.rel (0) target = $region13
    $region12: #{xvec_forward.1} parent=1 // pred_region
      _
    $region13: #{xvec_forward.1} parent=1 // pred_fallthru
      _
    // Predicated region
    $region14: #{xvec_forward.1} parent=1 // pred_check
      _
    $region15: #{xvec_forward.1} parent=1 // pred_check_branch
      %27 = sbr.rel (0) target = $region17
    $region16: #{xvec_forward.1} parent=1 // pred_region
      %28 = dma.done [#allocation3], 5376
    $region17: #{xvec_forward.1} parent=1 // pred_fallthru
      _
    %v30 = vld [vmem:[%s0] sm:$0xff]
    %v31 = vld [vmem:[%s0 + $0x8] sm:$0xff]
    %v32 = vld [vmem:[%s0 + $0x10] sm:$0xff]
    %v33 = vld [vmem:[%s0 + $0x18] sm:$0xff]
    %v34 = vld [vmem:[%s0 + $0x20] sm:$0xff]
    %v35 = vld [vmem:[%s0 + $0x28] sm:$0xff]
    %v36 = vld [vmem:[%s0 + $0x30] sm:$0xff]
    %v37 = vld [vmem:[%s0 + $0x38] sm:$0xff]
    %v38 = vld [vmem:[%s0 + $0x40] sm:$0xff]
    %v39 = vld [vmem:[%s0 + $0x48] sm:$0xff]
    %v40 = vld [vmem:[%s0 + $0x50] sm:$0xff]
    %v41 = vld [vmem:[%s0 + $0x58] sm:$0xff]
    %v42 = vld [vmem:[%s0 + $0x60] sm:$0xff]
    %v43 = vld [vmem:[%s0 + $0x68] sm:$0xff]
    %v44 = vld [vmem:[%s0 + $0x70] sm:$0xff]
    %v45 = vld [vmem:[%s0 + $0x78] sm:$0xff]
    %v46 = vpack.c.bf16 %v31, %v30
    %v47 = vpack.c.bf16 %v33, %v32
    %v48 = vpack.c.bf16 %v35, %v34
    %v49 = vpack.c.bf16 %v37, %v36
    %v50 = vpack.c.bf16 %v39, %v38
    %v51 = vpack.c.bf16 %v41, %v40
    %v52 = vpack.c.bf16 %v43, %v42
    %v53 = vpack.c.bf16 %v45, %v44
    %v54 = vld [vmem:[#allocation2] sm:$0xf]
    %v55 = vld [vmem:[#allocation2 + $0x4] sm:$0xf]
    %v56 = vld [vmem:[#allocation2 + $0x8] sm:$0xf]
    %v57 = vld [vmem:[#allocation2 + $0xc] sm:$0xf]
    %v58 = vld [vmem:[#allocation2 + $0x10] sm:$0xf]
    %v59 = vld [vmem:[#allocation2 + $0x14] sm:$0xf]
    %v60 = vld [vmem:[#allocation2 + $0x18] sm:$0xf]
    %v61 = vld [vmem:[#allocation2 + $0x1c] sm:$0xf]
    %v62 = vld [vmem:[#allocation2 + $0x20] sm:$0xf]
    %v63 = vld [vmem:[#allocation2 + $0x24] sm:$0xf]
    %v64 = vld [vmem:[#allocation2 + $0x28] sm:$0xf]
    %v65 = vld [vmem:[#allocation2 + $0x2c] sm:$0xf]
    %v66 = vld [vmem:[#allocation2 + $0x30] sm:$0xf]
    %v67 = vld [vmem:[#allocation2 + $0x34] sm:$0xf]
    %v68 = vld [vmem:[%s2] sm:$0x1]
    %v69 = vld [vmem:[%s2 + $0x1] sm:$0x1]
    %vm70 = vsmask.f32 7424
    %v72 = vshrl.u32 %v46, 16
    %v74 = vshll.u32 %v46, 16
    %v76 = vrot.slane %v74, 1
    %v77 = vor.u32 %v72, %v76
    %v79 = vshll.u32 %v47, 16
    %v81 = vrot.slane %v79, 1
    %v82 = vsel %vm70, %v77, %v81
    %v83 = vshrl.u32 %v47, 16
    %v85 = vor.u32 %v83, %v81
    %v87 = vshll.u32 %v48, 16
    %v89 = vrot.slane %v87, 1
    %v90 = vsel %vm70, %v85, %v89
    %v91 = vshrl.u32 %v48, 16
    %v93 = vor.u32 %v91, %v89
    %v95 = vshll.u32 %v49, 16
    %v97 = vrot.slane %v95, 1
    %v98 = vsel %vm70, %v93, %v97
    %v99 = vshrl.u32 %v49, 16
    %v101 = vor.u32 %v99, %v97
    %102 = vrot.lane.b32.xlu0 %v82, 16
    %v103 = vpop.permute.xlu0 %102
    %104 = vrot.lane.b32.xlu0 %v90, 16
    %v105 = vpop.permute.xlu0 %104
    %106 = vrot.lane.b32.xlu0 %v98, 16
    %v107 = vpop.permute.xlu0 %106
    %108 = vrot.lane.b32.xlu0 %v101, 16
    %v109 = vpop.permute.xlu0 %108
    %vm114 = vcmask 1046528
    %v115 = vrot.slane %v46, 1
    %v116 = vrot.slane %v47, 1
    %v117 = vsel %vm114, %v115, %v116
    %v118 = vrot.slane %v48, 1
    %v119 = vsel %vm114, %v116, %v118
    %v120 = vrot.slane %v49, 1
    %v121 = vsel %vm114, %v118, %v120
    %122 = vrot.lane.b32.xlu0 %v117, 32
    %v123 = vpop.permute.xlu0 %122
    %124 = vrot.lane.b32.xlu0 %v119, 32
    %v125 = vpop.permute.xlu0 %124
    %126 = vrot.lane.b32.xlu0 %v121, 32
    %v127 = vpop.permute.xlu0 %126
    %128 = vrot.lane.b32.xlu0 %v120, 32
    %v129 = vpop.permute.xlu0 %128
    %vm130 = vsmask.f32 6400
    %v131 = vrot.slane %v72, 1
    %v132 = vrot.slane %v74, 2
    %v133 = vor.u32 %v131, %v132
    %v134 = vrot.slane %v83, 1
    %v135 = vrot.slane %v79, 2
    %v136 = vor.u32 %v134, %v135
    %v137 = vsel %vm130, %v133, %v136
    %v138 = vrot.slane %v91, 1
    %v139 = vrot.slane %v87, 2
    %v140 = vor.u32 %v138, %v139
    %v141 = vsel %vm130, %v136, %v140
    %v142 = vrot.slane %v99, 1
    %v143 = vrot.slane %v95, 2
    %v144 = vor.u32 %v142, %v143
    %v145 = vsel %vm130, %v140, %v144
    %146 = vrot.lane.b32.xlu0 %v137, 48
    %v147 = vpop.permute.xlu0 %146
    %148 = vrot.lane.b32.xlu0 %v141, 48
    %v149 = vpop.permute.xlu0 %148
    %150 = vrot.lane.b32.xlu0 %v145, 48
    %v151 = vpop.permute.xlu0 %150
    %152 = vrot.lane.b32.xlu0 %v144, 48
    %v153 = vpop.permute.xlu0 %152
    %vm154 = vcmask 1045504
    %v155 = vrot.slane %v46, 2
    %v156 = vrot.slane %v47, 2
    %v157 = vsel %vm154, %v155, %v156
    %v158 = vrot.slane %v48, 2
    %v159 = vsel %vm154, %v156, %v158
    %v160 = vrot.slane %v49, 2
    %v161 = vsel %vm154, %v158, %v160
    %162 = vrot.lane.b32.xlu0 %v157, 64
    %v163 = vpop.permute.xlu0 %162
    %164 = vrot.lane.b32.xlu0 %v159, 64
    %v165 = vpop.permute.xlu0 %164
    %166 = vrot.lane.b32.xlu0 %v161, 64
    %v167 = vpop.permute.xlu0 %166
    %168 = vrot.lane.b32.xlu0 %v160, 64
    %v169 = vpop.permute.xlu0 %168
    %vm170 = vcmask 130048
    %v172 = vsel %vm170, %v46, %v103
    %v174 = vsel %vm170, %v47, %v105
    %v176 = vsel %vm170, %v48, %v107
    %v178 = vsel %vm170, %v49, %v109
    %vm179 = vcmask 261120
    %v181 = vsel %vm179, %v172, %v123
    %v183 = vsel %vm179, %v174, %v125
    %v185 = vsel %vm179, %v176, %v127
    %v187 = vsel %vm179, %v178, %v129
    %vm188 = vcmask 392192
    %v190 = vsel %vm188, %v181, %v147
    %v192 = vsel %vm188, %v183, %v149
    %v194 = vsel %vm188, %v185, %v151
    %v196 = vsel %vm188, %v187, %v153
    %vm197 = vcmask 523264
    %v199 = vsel %vm197, %v190, %v163
    %v201 = vsel %vm197, %v192, %v165
    %v203 = vsel %vm197, %v194, %v167
    %v205 = vsel %vm197, %v196, %v169
    %v207 = vshrl.u32 %v50, 16
    %v209 = vshll.u32 %v50, 16
    %v211 = vrot.slane %v209, 1
    %v212 = vor.u32 %v207, %v211
    %v214 = vshll.u32 %v51, 16
    %v216 = vrot.slane %v214, 1
    %v217 = vsel %vm70, %v212, %v216
    %v218 = vshrl.u32 %v51, 16
    %v220 = vor.u32 %v218, %v216
    %v222 = vshll.u32 %v52, 16
    %v224 = vrot.slane %v222, 1
    %v225 = vsel %vm70, %v220, %v224
    %v226 = vshrl.u32 %v52, 16
    %v228 = vor.u32 %v226, %v224
    %v230 = vshll.u32 %v53, 16
    %v232 = vrot.slane %v230, 1
    %v233 = vsel %vm70, %v228, %v232
    %v234 = vshrl.u32 %v53, 16
    %v236 = vor.u32 %v234, %v232
    %237 = vrot.lane.b32.xlu0 %v217, 16
    %v238 = vpop.permute.xlu0 %237
    %239 = vrot.lane.b32.xlu0 %v225, 16
    %v240 = vpop.permute.xlu0 %239
    %241 = vrot.lane.b32.xlu0 %v233, 16
    %v242 = vpop.permute.xlu0 %241
    %243 = vrot.lane.b32.xlu0 %v236, 16
    %v244 = vpop.permute.xlu0 %243
    %v249 = vrot.slane %v50, 1
    %v250 = vrot.slane %v51, 1
    %v251 = vsel %vm114, %v249, %v250
    %v252 = vrot.slane %v52, 1
    %v253 = vsel %vm114, %v250, %v252
    %v254 = vrot.slane %v53, 1
    %v255 = vsel %vm114, %v252, %v254
    %256 = vrot.lane.b32.xlu0 %v251, 32
    %v257 = vpop.permute.xlu0 %256
    %258 = vrot.lane.b32.xlu0 %v253, 32
    %v259 = vpop.permute.xlu0 %258
    %260 = vrot.lane.b32.xlu0 %v255, 32
    %v261 = vpop.permute.xlu0 %260
    %262 = vrot.lane.b32.xlu0 %v254, 32
    %v263 = vpop.permute.xlu0 %262
    %v264 = vrot.slane %v207, 1
    %v265 = vrot.slane %v209, 2
    %v266 = vor.u32 %v264, %v265
    %v267 = vrot.slane %v218, 1
    %v268 = vrot.slane %v214, 2
    %v269 = vor.u32 %v267, %v268
    %v270 = vsel %vm130, %v266, %v269
    %v271 = vrot.slane %v226, 1
    %v272 = vrot.slane %v222, 2
    %v273 = vor.u32 %v271, %v272
    %v274 = vsel %vm130, %v269, %v273
    %v275 = vrot.slane %v234, 1
    %v276 = vrot.slane %v230, 2
    %v277 = vor.u32 %v275, %v276
    %v278 = vsel %vm130, %v273, %v277
    %279 = vrot.lane.b32.xlu0 %v270, 48
    %v280 = vpop.permute.xlu0 %279
    %281 = vrot.lane.b32.xlu0 %v274, 48
    %v282 = vpop.permute.xlu0 %281
    %283 = vrot.lane.b32.xlu0 %v278, 48
    %v284 = vpop.permute.xlu0 %283
    %285 = vrot.lane.b32.xlu0 %v277, 48
    %v286 = vpop.permute.xlu0 %285
    %v287 = vrot.slane %v50, 2
    %v288 = vrot.slane %v51, 2
    %v289 = vsel %vm154, %v287, %v288
    %v290 = vrot.slane %v52, 2
    %v291 = vsel %vm154, %v288, %v290
    %v292 = vrot.slane %v53, 2
    %v293 = vsel %vm154, %v290, %v292
    %294 = vrot.lane.b32.xlu0 %v289, 64
    %v295 = vpop.permute.xlu0 %294
    %296 = vrot.lane.b32.xlu0 %v291, 64
    %v297 = vpop.permute.xlu0 %296
    %298 = vrot.lane.b32.xlu0 %v293, 64
    %v299 = vpop.permute.xlu0 %298
    %300 = vrot.lane.b32.xlu0 %v292, 64
    %v301 = vpop.permute.xlu0 %300
    %v303 = vsel %vm170, %v50, %v238
    %v305 = vsel %vm170, %v51, %v240
    %v307 = vsel %vm170, %v52, %v242
    %v309 = vsel %vm170, %v53, %v244
    %v311 = vsel %vm179, %v303, %v257
    %v313 = vsel %vm179, %v305, %v259
    %v315 = vsel %vm179, %v307, %v261
    %v317 = vsel %vm179, %v309, %v263
    %v319 = vsel %vm188, %v311, %v280
    %v321 = vsel %vm188, %v313, %v282
    %v323 = vsel %vm188, %v315, %v284
    %v325 = vsel %vm188, %v317, %v286
    %v327 = vsel %vm197, %v319, %v295
    %v329 = vsel %vm197, %v321, %v297
    %v331 = vsel %vm197, %v323, %v299
    %v333 = vsel %vm197, %v325, %v301
    %v338 = vrot.slane %v327, 2
    %v339 = vrot.slane %v329, 2
    %v340 = vsel %vm154, %v338, %v339
    %v341 = vrot.slane %v331, 2
    %v342 = vsel %vm154, %v339, %v341
    %v343 = vrot.slane %v333, 2
    %v344 = vsel %vm154, %v341, %v343
    %vm345 = vcmask 1045504
    %v347 = vsel %vm345, %v205, %v338
    %v348 = vlaneseq
    %v349 = vshrl.u32 %v348, 7
    %v350 = vsub.s32 0, %v349
    %v351 = vrot.slane %v68, %v350
    %v362 = vunpack.c.l.b16 %v54
    %v363 = vunpack.c.l.b16 %v55
    %v364 = vunpack.c.l.b16 %v56
    %v365 = vunpack.c.l.b16 %v57
    %v366 = vunpack.c.l.b16 %v58
    %v367 = vunpack.c.l.b16 %v59
    %v368 = vunpack.c.l.b16 %v60
    %v369 = vunpack.c.l.b16 %v61
    %v370 = vunpack.c.l.b16 %v62
    %v371 = vunpack.c.l.b16 %v63
    %v372 = vpack.c.b16 %v363, %v362
    %v373 = vpack.c.b16 %v365, %v364
    %v374 = vpack.c.b16 %v367, %v366
    %v375 = vpack.c.b16 %v369, %v368
    %v376 = vpack.c.b16 %v371, %v370
    %vm382 = vcmask 654336
    %v383 = vsel %vm382, %v199, 0
    %v385 = vsel %vm382, %v201, 0
    %v387 = vsel %vm382, %v203, 0
    %v389 = vsel %vm382, %v347, 0
    %v392 = vsel %vm382, %v340, 0
    %v395 = vsel %vm382, %v342, 0
    %v398 = vsel %vm382, %v344, 0
    %v401 = vsel %vm382, %v343, 0
    %403 = vmatprep.subr.bf16.mxu0 0
    %404 = vmatpush1.bf16.msra.mxu0 %v372
    %405 = vmatprep.subr.bf16.mxu0 0
    %406 = vmatpush1.bf16.msra.mxu0 %v373
    %407 = vmatprep.subr.bf16.mxu0 0
    %408 = vmatpush1.bf16.msra.mxu0 %v374
    %409 = vmatprep.subr.bf16.mxu0 0
    %410 = vmatpush1.bf16.msra.mxu0 %v375
    %411 = vmatprep.subr.bf16.mxu0 0
    %412 = vmatpush1.bf16.msra.mxu0 %v376
    %413 = vmatprep.subr.bf16.mxu0 0
    %414 = vmatpush1.bf16.msra.mxu0 0
    %415 = vmatprep.subr.bf16.mxu0 0
    %416 = vmatpush1.bf16.msra.mxu0 0
    %417 = vmatprep.subr.bf16.mxu0 0
    %418 = vmatpush1.bf16.msra.mxu0 0
    %419 = vmatprep.subr.bf16.mxu0 0
    %420 = vmatpush1.bf16.msra.mxu0 0
    %421 = vmatprep.subr.bf16.mxu0 0
    %422 = vmatpush1.bf16.msra.mxu0 0
    %423 = vmatprep.subr.bf16.mxu0 0
    %424 = vmatpush1.bf16.msra.mxu0 0
    %425 = vmatprep.subr.bf16.mxu0 0
    %426 = vmatpush1.bf16.msra.mxu0 0
    %427 = vmatprep.subr.bf16.mxu0 0
    %428 = vmatpush1.bf16.msra.mxu0 0
    %429 = vmatprep.subr.bf16.mxu0 0
    %430 = vmatpush1.bf16.msra.mxu0 0
    %431 = vmatprep.subr.bf16.mxu0 0
    %432 = vmatpush1.bf16.msra.mxu0 0
    %433 = vmatprep.subr.bf16.mxu0 0
    %434 = vmatpush1.bf16.msra.mxu0 0
    %435 = vmatprep.mubr.bf16.mxu0 0
    %436 = vmatmul.mubr.bf16.gmra.mrb[0].mxu0 %v383
    %v437 = vpop.f32.mrb[0].mxu0
    %v438 = vadd.f32 %v351, %v437
    %v439 = vpop.f32.mrb[0].mxu0
    %v440 = vpop.f32.mrb[0].mxu0
    %v441 = vadd.f32 %v351, %v440
    %v442 = vpop.f32.mrb[0].mxu0
    %443 = vmatprep.mubr.bf16.mxu0 0
    %444 = vmatmul.mubr.bf16.gmra.mrb[0].mxu0 %v385
    %v445 = vpop.f32.mrb[0].mxu0
    %v446 = vadd.f32 %v351, %v445
    %v447 = vpop.f32.mrb[0].mxu0
    %v448 = vpop.f32.mrb[0].mxu0
    %v449 = vadd.f32 %v351, %v448
    %v450 = vpop.f32.mrb[0].mxu0
    %451 = vmatprep.mubr.bf16.mxu0 0
    %452 = vmatmul.mubr.bf16.gmra.mrb[0].mxu0 %v387
    %v453 = vpop.f32.mrb[0].mxu0
    %v454 = vadd.f32 %v351, %v453
    %v455 = vpop.f32.mrb[0].mxu0
    %v456 = vpop.f32.mrb[0].mxu0
    %v457 = vadd.f32 %v351, %v456
    %v458 = vpop.f32.mrb[0].mxu0
    %459 = vmatprep.mubr.bf16.mxu0 0
    %460 = vmatmul.mubr.bf16.gmra.mrb[0].mxu0 %v389
    %v461 = vpop.f32.mrb[0].mxu0
    %v462 = vadd.f32 %v351, %v461
    %v463 = vpop.f32.mrb[0].mxu0
    %v464 = vpop.f32.mrb[0].mxu0
    %v465 = vadd.f32 %v351, %v464
    %v466 = vpop.f32.mrb[0].mxu0
    %467 = vmatprep.mubr.bf16.mxu0 0
    %468 = vmatmul.mubr.bf16.gmra.mrb[0].mxu0 %v392
    %v469 = vpop.f32.mrb[0].mxu0
    %v470 = vadd.f32 %v351, %v469
    %v471 = vpop.f32.mrb[0].mxu0
    %v472 = vpop.f32.mrb[0].mxu0
    %v473 = vadd.f32 %v351, %v472
    %v474 = vpop.f32.mrb[0].mxu0
    %475 = vmatprep.mubr.bf16.mxu0 0
    %476 = vmatmul.mubr.bf16.gmra.mrb[0].mxu0 %v395
    %v477 = vpop.f32.mrb[0].mxu0
    %v478 = vadd.f32 %v351, %v477
    %v479 = vpop.f32.mrb[0].mxu0
    %v480 = vpop.f32.mrb[0].mxu0
    %v481 = vadd.f32 %v351, %v480
    %v482 = vpop.f32.mrb[0].mxu0
    %483 = vmatprep.mubr.bf16.mxu0 0
    %484 = vmatmul.mubr.bf16.gmra.mrb[0].mxu0 %v398
    %v485 = vpop.f32.mrb[0].mxu0
    %v486 = vadd.f32 %v351, %v485
    %v487 = vpop.f32.mrb[0].mxu0
    %v488 = vpop.f32.mrb[0].mxu0
    %v489 = vadd.f32 %v351, %v488
    %v490 = vpop.f32.mrb[0].mxu0
    %491 = vmatprep.mubr.bf16.mxu0 0
    %492 = vmatmul.mubr.bf16.gmra.mrb[0].mxu0 %v401
    %v493 = vpop.f32.mrb[0].mxu0
    %v494 = vadd.f32 %v351, %v493
    %v495 = vpop.f32.mrb[0].mxu0
    %v496 = vpop.f32.mrb[0].mxu0
    %v497 = vpop.f32.mrb[0].mxu0
    %498 = vdwg.mxu0
    %vm499 = vcmp.gt.f32.partialorder %v438, 0.0
    %vm500 = vcmp.gt.f32.partialorder %v441, 0.0
    %vm501 = vcmp.gt.f32.partialorder %v446, 0.0
    %vm502 = vcmp.gt.f32.partialorder %v449, 0.0
    %vm503 = vcmp.gt.f32.partialorder %v454, 0.0
    %vm504 = vcmp.gt.f32.partialorder %v457, 0.0
    %vm505 = vcmp.gt.f32.partialorder %v462, 0.0
    %vm506 = vcmp.gt.f32.partialorder %v465, 0.0
    %vm507 = vcmp.gt.f32.partialorder %v470, 0.0
    %vm508 = vcmp.gt.f32.partialorder %v473, 0.0
    %vm509 = vcmp.gt.f32.partialorder %v478, 0.0
    %vm510 = vcmp.gt.f32.partialorder %v481, 0.0
    %vm511 = vcmp.gt.f32.partialorder %v486, 0.0
    %vm512 = vcmp.gt.f32.partialorder %v489, 0.0
    %vm513 = vcmp.gt.f32.partialorder %v494, 0.0
    %v514 = vmul.f32 %v438, 0.01
    %v515 = vmul.f32 %v441, 0.01
    %v516 = vmul.f32 %v446, 0.01
    %v517 = vmul.f32 %v449, 0.01
    %v518 = vmul.f32 %v454, 0.01
    %v519 = vmul.f32 %v457, 0.01
    %v520 = vmul.f32 %v462, 0.01
    %v521 = vmul.f32 %v465, 0.01
    %v522 = vmul.f32 %v470, 0.01
    %v523 = vmul.f32 %v473, 0.01
    %v524 = vmul.f32 %v478, 0.01
    %v525 = vmul.f32 %v481, 0.01
    %v526 = vmul.f32 %v486, 0.01
    %v527 = vmul.f32 %v489, 0.01
    %v528 = vmul.f32 %v494, 0.01
    %v529 = vsel %vm499, %v438, %v514
    %v530 = vsel %vm500, %v441, %v515
    %v531 = vsel %vm501, %v446, %v516
    %v532 = vsel %vm502, %v449, %v517
    %v533 = vsel %vm503, %v454, %v518
    %v534 = vsel %vm504, %v457, %v519
    %v535 = vsel %vm505, %v462, %v520
    %v536 = vsel %vm506, %v465, %v521
    %v537 = vsel %vm507, %v470, %v522
    %v538 = vsel %vm508, %v473, %v523
    %v539 = vsel %vm509, %v478, %v524
    %v540 = vsel %vm510, %v481, %v525
    %v541 = vsel %vm511, %v486, %v526
    %v542 = vsel %vm512, %v489, %v527
    %v543 = vsel %vm513, %v494, %v528
    %v544 = vpack.c.bf16 %v530, %v529
    %v545 = vpack.c.bf16 %v532, %v531
    %v546 = vpack.c.bf16 %v534, %v533
    %v547 = vpack.c.bf16 %v536, %v535
    %v548 = vpack.c.bf16 %v538, %v537
    %v549 = vpack.c.bf16 %v540, %v539
    %v550 = vpack.c.bf16 %v542, %v541
    %v551 = vpack.c.bf16 %v543, %v543
    %v552 = vlaneseq
    %v553 = vshrl.u32 %v552, 7
    %v554 = vsub.s32 0, %v553
    %v555 = vrot.slane %v69, %v554
    %v560 = vunpack.c.l.b16 %v64
    %v561 = vunpack.c.l.b16 %v65
    %v562 = vunpack.c.l.b16 %v66
    %v563 = vunpack.c.l.b16 %v67
    %v564 = vpack.c.b16 %v561, %v560
    %v565 = vpack.c.b16 %v563, %v562
    %v569 = vsel %vm179, %v544, 0
    %v572 = vsel %vm179, %v545, 0
    %v575 = vsel %vm179, %v546, 0
    %v578 = vsel %vm179, %v547, 0
    %v581 = vsel %vm179, %v548, 0
    %v584 = vsel %vm179, %v549, 0
    %v587 = vsel %vm179, %v550, 0
    %v590 = vsel %vm179, %v551, 0
    %592 = vmatprep.subr.bf16.mxu0 0
    %593 = vmatpush1.bf16.msra.mxu0 %v564
    %594 = vmatprep.subr.bf16.mxu0 0
    %595 = vmatpush1.bf16.msra.mxu0 %v565
    %596 = vmatprep.subr.bf16.mxu0 0
    %597 = vmatpush1.bf16.msra.mxu0 0
    %598 = vmatprep.subr.bf16.mxu0 0
    %599 = vmatpush1.bf16.msra.mxu0 0
    %600 = vmatprep.subr.bf16.mxu0 0
    %601 = vmatpush1.bf16.msra.mxu0 0
    %602 = vmatprep.subr.bf16.mxu0 0
    %603 = vmatpush1.bf16.msra.mxu0 0
    %604 = vmatprep.subr.bf16.mxu0 0
    %605 = vmatpush1.bf16.msra.mxu0 0
    %606 = vmatprep.subr.bf16.mxu0 0
    %607 = vmatpush1.bf16.msra.mxu0 0
    %608 = vmatprep.subr.bf16.mxu0 0
    %609 = vmatpush1.bf16.msra.mxu0 0
    %610 = vmatprep.subr.bf16.mxu0 0
    %611 = vmatpush1.bf16.msra.mxu0 0
    %612 = vmatprep.subr.bf16.mxu0 0
    %613 = vmatpush1.bf16.msra.mxu0 0
    %614 = vmatprep.subr.bf16.mxu0 0
    %615 = vmatpush1.bf16.msra.mxu0 0
    %616 = vmatprep.subr.bf16.mxu0 0
    %617 = vmatpush1.bf16.msra.mxu0 0
    %618 = vmatprep.subr.bf16.mxu0 0
    %619 = vmatpush1.bf16.msra.mxu0 0
    %620 = vmatprep.subr.bf16.mxu0 0
    %621 = vmatpush1.bf16.msra.mxu0 0
    %622 = vmatprep.subr.bf16.mxu0 0
    %623 = vmatpush1.bf16.msra.mxu0 0
    %624 = vmatprep.mubr.bf16.mxu0 0
    %625 = vmatmul.mubr.bf16.gmra.mrb[0].mxu0 %v569
    %v626 = vpop.f32.mrb[0].mxu0
    %v627 = vadd.f32 %v555, %v626
    %v628 = vpop.f32.mrb[0].mxu0
    %v629 = vpop.f32.mrb[0].mxu0
    %v630 = vadd.f32 %v555, %v629
    %v631 = vpop.f32.mrb[0].mxu0
    %632 = vmatprep.mubr.bf16.mxu0 0
    %633 = vmatmul.mubr.bf16.gmra.mrb[0].mxu0 %v572
    %v634 = vpop.f32.mrb[0].mxu0
    %v635 = vadd.f32 %v555, %v634
    %v636 = vpop.f32.mrb[0].mxu0
    %v637 = vpop.f32.mrb[0].mxu0
    %v638 = vadd.f32 %v555, %v637
    %v639 = vpop.f32.mrb[0].mxu0
    %640 = vmatprep.mubr.bf16.mxu0 0
    %641 = vmatmul.mubr.bf16.gmra.mrb[0].mxu0 %v575
    %v642 = vpop.f32.mrb[0].mxu0
    %v643 = vadd.f32 %v555, %v642
    %v644 = vpop.f32.mrb[0].mxu0
    %v645 = vpop.f32.mrb[0].mxu0
    %v646 = vadd.f32 %v555, %v645
    %v647 = vpop.f32.mrb[0].mxu0
    %648 = vmatprep.mubr.bf16.mxu0 0
    %649 = vmatmul.mubr.bf16.gmra.mrb[0].mxu0 %v578
    %v650 = vpop.f32.mrb[0].mxu0
    %v651 = vadd.f32 %v555, %v650
    %v652 = vpop.f32.mrb[0].mxu0
    %v653 = vpop.f32.mrb[0].mxu0
    %v654 = vadd.f32 %v555, %v653
    %v655 = vpop.f32.mrb[0].mxu0
    %656 = vmatprep.mubr.bf16.mxu0 0
    %657 = vmatmul.mubr.bf16.gmra.mrb[0].mxu0 %v581
    %v658 = vpop.f32.mrb[0].mxu0
    %v659 = vadd.f32 %v555, %v658
    %v660 = vpop.f32.mrb[0].mxu0
    %v661 = vpop.f32.mrb[0].mxu0
    %v662 = vadd.f32 %v555, %v661
    %v663 = vpop.f32.mrb[0].mxu0
    %664 = vmatprep.mubr.bf16.mxu0 0
    %665 = vmatmul.mubr.bf16.gmra.mrb[0].mxu0 %v584
    %v666 = vpop.f32.mrb[0].mxu0
    %v667 = vadd.f32 %v555, %v666
    %v668 = vpop.f32.mrb[0].mxu0
    %v669 = vpop.f32.mrb[0].mxu0
    %v670 = vadd.f32 %v555, %v669
    %v671 = vpop.f32.mrb[0].mxu0
    %672 = vmatprep.mubr.bf16.mxu0 0
    %673 = vmatmul.mubr.bf16.gmra.mrb[0].mxu0 %v587
    %v674 = vpop.f32.mrb[0].mxu0
    %v675 = vadd.f32 %v555, %v674
    %v676 = vpop.f32.mrb[0].mxu0
    %v677 = vpop.f32.mrb[0].mxu0
    %v678 = vadd.f32 %v555, %v677
    %v679 = vpop.f32.mrb[0].mxu0
    %680 = vmatprep.mubr.bf16.mxu0 0
    %681 = vmatmul.mubr.bf16.gmra.mrb[0].mxu0 %v590
    %v682 = vpop.f32.mrb[0].mxu0
    %v683 = vadd.f32 %v555, %v682
    %v684 = vpop.f32.mrb[0].mxu0
    %v685 = vpop.f32.mrb[0].mxu0
    %v686 = vpop.f32.mrb[0].mxu0
    %687 = vdwg.mxu0
    %vm688 = vcmp.gt.f32.partialorder %v627, 0.0
    %vm689 = vcmp.gt.f32.partialorder %v630, 0.0
    %vm690 = vcmp.gt.f32.partialorder %v635, 0.0
    %vm691 = vcmp.gt.f32.partialorder %v638, 0.0
    %vm692 = vcmp.gt.f32.partialorder %v643, 0.0
    %vm693 = vcmp.gt.f32.partialorder %v646, 0.0
    %vm694 = vcmp.gt.f32.partialorder %v651, 0.0
    %vm695 = vcmp.gt.f32.partialorder %v654, 0.0
    %vm696 = vcmp.gt.f32.partialorder %v659, 0.0
    %vm697 = vcmp.gt.f32.partialorder %v662, 0.0
    %vm698 = vcmp.gt.f32.partialorder %v667, 0.0
    %vm699 = vcmp.gt.f32.partialorder %v670, 0.0
    %vm700 = vcmp.gt.f32.partialorder %v675, 0.0
    %vm701 = vcmp.gt.f32.partialorder %v678, 0.0
    %vm702 = vcmp.gt.f32.partialorder %v683, 0.0
    %v703 = vmul.f32 %v627, 0.01
    %v704 = vmul.f32 %v630, 0.01
    %v705 = vmul.f32 %v635, 0.01
    %v706 = vmul.f32 %v638, 0.01
    %v707 = vmul.f32 %v643, 0.01
    %v708 = vmul.f32 %v646, 0.01
    %v709 = vmul.f32 %v651, 0.01
    %v710 = vmul.f32 %v654, 0.01
    %v711 = vmul.f32 %v659, 0.01
    %v712 = vmul.f32 %v662, 0.01
    %v713 = vmul.f32 %v667, 0.01
    %v714 = vmul.f32 %v670, 0.01
    %v715 = vmul.f32 %v675, 0.01
    %v716 = vmul.f32 %v678, 0.01
    %v717 = vmul.f32 %v683, 0.01
    %v718 = vsel %vm688, %v627, %v703
    %v719 = vsel %vm689, %v630, %v704
    %v720 = vsel %vm690, %v635, %v705
    %v721 = vsel %vm691, %v638, %v706
    %v722 = vsel %vm692, %v643, %v707
    %v723 = vsel %vm693, %v646, %v708
    %v724 = vsel %vm694, %v651, %v709
    %v725 = vsel %vm695, %v654, %v710
    %v726 = vsel %vm696, %v659, %v711
    %v727 = vsel %vm697, %v662, %v712
    %v728 = vsel %vm698, %v667, %v713
    %v729 = vsel %vm699, %v670, %v714
    %v730 = vsel %vm700, %v675, %v715
    %v731 = vsel %vm701, %v678, %v716
    %v732 = vsel %vm702, %v683, %v717
    %v733 = vpack.c.bf16 %v719, %v718
    %v734 = vpack.c.bf16 %v721, %v720
    %v735 = vpack.c.bf16 %v723, %v722
    %v736 = vpack.c.bf16 %v725, %v724
    %v737 = vpack.c.bf16 %v727, %v726
    %v738 = vpack.c.bf16 %v729, %v728
    %v739 = vpack.c.bf16 %v731, %v730
    %v740 = vpack.c.bf16 %v732, %v732
    %v741 = vld [vmem:[#allocation2 + $0x38] sm:$0xf]
    %v742 = vld [vmem:[#allocation2 + $0x3c] sm:$0xf]
    %v743 = vld [vmem:[#allocation2 + $0x40] sm:$0xf]
    %v744 = vld [vmem:[#allocation2 + $0x44] sm:$0xf]
    %v745 = vld [vmem:[#allocation2 + $0x48] sm:$0xf]
    %v746 = vld [vmem:[#allocation2 + $0x4c] sm:$0xf]
    %v747 = vld [vmem:[#allocation2 + $0x50] sm:$0xf]
    %v748 = vld [vmem:[#allocation2 + $0x54] sm:$0xf]
    %v749 = vld [vmem:[#allocation2 + $0x58] sm:$0xf]
    %v750 = vld [vmem:[#allocation2 + $0x60] sm:$0xf]
    %v751 = vld [vmem:[#allocation2 + $0x64] sm:$0xf]
    %v752 = vld [vmem:[#allocation2 + $0x68] sm:$0xf]
    %v753 = vld [vmem:[#allocation2 + $0x6c] sm:$0xf]
    %v754 = vld [vmem:[%s2 + $0x2] sm:$0x1]
    %v755 = vld [vmem:[%s2 + $0x3] sm:$0x1]
    %v760 = vrot.slane %v733, 1
    %v761 = vrot.slane %v734, 1
    %v762 = vsel %vm114, %v760, %v761
    %v763 = vrot.slane %v735, 1
    %v764 = vsel %vm114, %v761, %v763
    %v765 = vrot.slane %v736, 1
    %v766 = vsel %vm114, %v763, %v765
    %767 = vrot.lane.b32.xlu0 %v762, 24
    %v768 = vpop.permute.xlu0 %767
    %769 = vrot.lane.b32.xlu0 %v764, 24
    %v770 = vpop.permute.xlu0 %769
    %771 = vrot.lane.b32.xlu0 %v766, 24
    %v772 = vpop.permute.xlu0 %771
    %773 = vrot.lane.b32.xlu0 %v765, 24
    %v774 = vpop.permute.xlu0 %773
    %v775 = vrot.slane %v733, 2
    %v776 = vrot.slane %v734, 2
    %v777 = vsel %vm154, %v775, %v776
    %v778 = vrot.slane %v735, 2
    %v779 = vsel %vm154, %v776, %v778
    %v780 = vrot.slane %v736, 2
    %v781 = vsel %vm154, %v778, %v780
    %782 = vrot.lane.b32.xlu0 %v777, 48
    %v783 = vpop.permute.xlu0 %782
    %784 = vrot.lane.b32.xlu0 %v779, 48
    %v785 = vpop.permute.xlu0 %784
    %786 = vrot.lane.b32.xlu0 %v781, 48
    %v787 = vpop.permute.xlu0 %786
    %788 = vrot.lane.b32.xlu0 %v780, 48
    %v789 = vpop.permute.xlu0 %788
    %vm790 = vcmask 195584
    %v793 = vsel %vm790, %v733, %v768
    %v796 = vsel %vm790, %v734, %v770
    %v799 = vsel %vm790, %v735, %v772
    %v802 = vsel %vm790, %v736, %v774
    %v804 = vsel %vm188, %v793, %v783
    %v806 = vsel %vm188, %v796, %v785
    %v808 = vsel %vm188, %v799, %v787
    %v810 = vsel %vm188, %v802, %v789
    %v815 = vrot.slane %v737, 1
    %v816 = vsel %vm114, %v765, %v815
    %v817 = vrot.slane %v738, 1
    %v818 = vsel %vm114, %v815, %v817
    %v819 = vrot.slane %v739, 1
    %v820 = vsel %vm114, %v817, %v819
    %v821 = vrot.slane %v740, 1
    %v822 = vsel %vm114, %v819, %v821
    %823 = vrot.lane.b32.xlu0 %v816, 24
    %v824 = vpop.permute.xlu0 %823
    %825 = vrot.lane.b32.xlu0 %v818, 24
    %v826 = vpop.permute.xlu0 %825
    %827 = vrot.lane.b32.xlu0 %v820, 24
    %v828 = vpop.permute.xlu0 %827
    %829 = vrot.lane.b32.xlu0 %v822, 24
    %v830 = vpop.permute.xlu0 %829
    %831 = vrot.lane.b32.xlu0 %v821, 24
    %v832 = vpop.permute.xlu0 %831
    %v833 = vrot.slane %v737, 2
    %v834 = vrot.slane %v738, 2
    %v835 = vsel %vm154, %v833, %v834
    %v836 = vrot.slane %v739, 2
    %v837 = vsel %vm154, %v834, %v836
    %v838 = vrot.slane %v740, 2
    %v839 = vsel %vm154, %v836, %v838
    %840 = vrot.lane.b32.xlu0 %v833, 48
    %v841 = vpop.permute.xlu0 %840
    %842 = vrot.lane.b32.xlu0 %v835, 48
    %v843 = vpop.permute.xlu0 %842
    %844 = vrot.lane.b32.xlu0 %v837, 48
    %v845 = vpop.permute.xlu0 %844
    %846 = vrot.lane.b32.xlu0 %v839, 48
    %v847 = vpop.permute.xlu0 %846
    %848 = vrot.lane.b32.xlu0 %v838, 48
    %v849 = vpop.permute.xlu0 %848
    %v851 = vsel %vm790, %v736, %v824
    %v854 = vsel %vm790, %v737, %v826
    %v857 = vsel %vm790, %v738, %v828
    %v860 = vsel %vm790, %v739, %v830
    %v863 = vsel %vm790, %v740, %v832
    %v865 = vsel %vm188, %v851, %v841
    %v867 = vsel %vm188, %v854, %v843
    %v869 = vsel %vm188, %v857, %v845
    %v871 = vsel %vm188, %v860, %v847
    %v873 = vsel %vm188, %v863, %v849
    %v879 = vrot.slane %v865, 2
    %v880 = vrot.slane %v867, 2
    %v881 = vsel %vm154, %v879, %v880
    %v882 = vrot.slane %v869, 2
    %v883 = vsel %vm154, %v880, %v882
    %v884 = vrot.slane %v871, 2
    %v885 = vsel %vm154, %v882, %v884
    %v886 = vrot.slane %v873, 2
    %v887 = vsel %vm154, %v884, %v886
    %vm888 = vcmask 1043456
    %v890 = vsel %vm888, %v810, %v881
    %v891 = vlaneseq
    %v892 = vshrl.u32 %v891, 7
    %v893 = vsub.s32 0, %v892
    %v894 = vrot.slane %v754, %v893
    %v904 = vunpack.c.l.b16 %v741
    %v905 = vunpack.c.l.b16 %v742
    %v906 = vunpack.c.l.b16 %v743
    %v907 = vunpack.c.l.b16 %v744
    %v908 = vunpack.c.l.b16 %v745
    %v909 = vunpack.c.l.b16 %v746
    %v910 = vunpack.c.l.b16 %v747
    %v911 = vunpack.c.l.b16 %v748
    %v912 = vunpack.c.l.b16 %v749
    %v913 = vpack.c.b16 %v905, %v904
    %v914 = vpack.c.b16 %v907, %v906
    %v915 = vpack.c.b16 %v909, %v908
    %v916 = vpack.c.b16 %v911, %v910
    %v917 = vpack.c.b16 %v912, %v912
    %vm922 = vcmask 588800
    %v923 = vsel %vm922, %v804, 0
    %v925 = vsel %vm922, %v806, 0
    %v927 = vsel %vm922, %v808, 0
    %v929 = vsel %vm922, %v890, 0
    %v932 = vsel %vm922, %v883, 0
    %v935 = vsel %vm922, %v885, 0
    %v938 = vsel %vm922, %v887, 0
    %v941 = vsel %vm888, %v917, 0
    %943 = vmatprep.subr.bf16.mxu0 0
    %944 = vmatpush1.bf16.msra.mxu0 %v913
    %945 = vmatprep.subr.bf16.mxu0 0
    %946 = vmatpush1.bf16.msra.mxu0 %v914
    %947 = vmatprep.subr.bf16.mxu0 0
    %948 = vmatpush1.bf16.msra.mxu0 %v915
    %949 = vmatprep.subr.bf16.mxu0 0
    %950 = vmatpush1.bf16.msra.mxu0 %v916
    %951 = vmatprep.subr.bf16.mxu0 0
    %952 = vmatpush1.bf16.msra.mxu0 %v941
    %953 = vmatprep.subr.bf16.mxu0 0
    %954 = vmatpush1.bf16.msra.mxu0 0
    %955 = vmatprep.subr.bf16.mxu0 0
    %956 = vmatpush1.bf16.msra.mxu0 0
    %957 = vmatprep.subr.bf16.mxu0 0
    %958 = vmatpush1.bf16.msra.mxu0 0
    %959 = vmatprep.subr.bf16.mxu0 0
    %960 = vmatpush1.bf16.msra.mxu0 0
    %961 = vmatprep.subr.bf16.mxu0 0
    %962 = vmatpush1.bf16.msra.mxu0 0
    %963 = vmatprep.subr.bf16.mxu0 0
    %964 = vmatpush1.bf16.msra.mxu0 0
    %965 = vmatprep.subr.bf16.mxu0 0
    %966 = vmatpush1.bf16.msra.mxu0 0
    %967 = vmatprep.subr.bf16.mxu0 0
    %968 = vmatpush1.bf16.msra.mxu0 0
    %969 = vmatprep.subr.bf16.mxu0 0
    %970 = vmatpush1.bf16.msra.mxu0 0
    %971 = vmatprep.subr.bf16.mxu0 0
    %972 = vmatpush1.bf16.msra.mxu0 0
    %973 = vmatprep.subr.bf16.mxu0 0
    %974 = vmatpush1.bf16.msra.mxu0 0
    %975 = vmatprep.mubr.bf16.mxu0 0
    %976 = vmatmul.mubr.bf16.gmra.mrb[0].mxu0 %v923
    %v977 = vpop.f32.mrb[0].mxu0
    %v978 = vadd.f32 %v894, %v977
    %v979 = vpop.f32.mrb[0].mxu0
    %v980 = vpop.f32.mrb[0].mxu0
    %v981 = vadd.f32 %v894, %v980
    %v982 = vpop.f32.mrb[0].mxu0
    %983 = vmatprep.mubr.bf16.mxu0 0
    %984 = vmatmul.mubr.bf16.gmra.mrb[0].mxu0 %v925
    %v985 = vpop.f32.mrb[0].mxu0
    %v986 = vadd.f32 %v894, %v985
    %v987 = vpop.f32.mrb[0].mxu0
    %v988 = vpop.f32.mrb[0].mxu0
    %v989 = vadd.f32 %v894, %v988
    %v990 = vpop.f32.mrb[0].mxu0
    %991 = vmatprep.mubr.bf16.mxu0 0
    %992 = vmatmul.mubr.bf16.gmra.mrb[0].mxu0 %v927
    %v993 = vpop.f32.mrb[0].mxu0
    %v994 = vadd.f32 %v894, %v993
    %v995 = vpop.f32.mrb[0].mxu0
    %v996 = vpop.f32.mrb[0].mxu0
    %v997 = vadd.f32 %v894, %v996
    %v998 = vpop.f32.mrb[0].mxu0
    %999 = vmatprep.mubr.bf16.mxu0 0
    %1000 = vmatmul.mubr.bf16.gmra.mrb[0].mxu0 %v929
    %v1001 = vpop.f32.mrb[0].mxu0
    %v1002 = vadd.f32 %v894, %v1001
    %v1003 = vpop.f32.mrb[0].mxu0
    %v1004 = vpop.f32.mrb[0].mxu0
    %v1005 = vadd.f32 %v894, %v1004
    %v1006 = vpop.f32.mrb[0].mxu0
    %1007 = vmatprep.mubr.bf16.mxu0 0
    %1008 = vmatmul.mubr.bf16.gmra.mrb[0].mxu0 %v932
    %v1009 = vpop.f32.mrb[0].mxu0
    %v1010 = vadd.f32 %v894, %v1009
    %v1011 = vpop.f32.mrb[0].mxu0
    %v1012 = vpop.f32.mrb[0].mxu0
    %v1013 = vadd.f32 %v894, %v1012
    %v1014 = vpop.f32.mrb[0].mxu0
    %1015 = vmatprep.mubr.bf16.mxu0 0
    %1016 = vmatmul.mubr.bf16.gmra.mrb[0].mxu0 %v935
    %v1017 = vpop.f32.mrb[0].mxu0
    %v1018 = vadd.f32 %v894, %v1017
    %v1019 = vpop.f32.mrb[0].mxu0
    %v1020 = vpop.f32.mrb[0].mxu0
    %v1021 = vadd.f32 %v894, %v1020
    %v1022 = vpop.f32.mrb[0].mxu0
    %1023 = vmatprep.mubr.bf16.mxu0 0
    %1024 = vmatmul.mubr.bf16.gmra.mrb[0].mxu0 %v938
    %v1025 = vpop.f32.mrb[0].mxu0
    %v1026 = vadd.f32 %v894, %v1025
    %v1027 = vpop.f32.mrb[0].mxu0
    %v1028 = vpop.f32.mrb[0].mxu0
    %v1029 = vadd.f32 %v894, %v1028
    %v1030 = vpop.f32.mrb[0].mxu0
    %1031 = vdwg.mxu0
    %vm1032 = vcmp.gt.f32.partialorder %v978, 0.0
    %vm1033 = vcmp.gt.f32.partialorder %v981, 0.0
    %vm1034 = vcmp.gt.f32.partialorder %v986, 0.0
    %vm1035 = vcmp.gt.f32.partialorder %v989, 0.0
    %vm1036 = vcmp.gt.f32.partialorder %v994, 0.0
    %vm1037 = vcmp.gt.f32.partialorder %v997, 0.0
    %vm1038 = vcmp.gt.f32.partialorder %v1002, 0.0
    %vm1039 = vcmp.gt.f32.partialorder %v1005, 0.0
    %vm1040 = vcmp.gt.f32.partialorder %v1010, 0.0
    %vm1041 = vcmp.gt.f32.partialorder %v1013, 0.0
    %vm1042 = vcmp.gt.f32.partialorder %v1018, 0.0
    %vm1043 = vcmp.gt.f32.partialorder %v1021, 0.0
    %vm1044 = vcmp.gt.f32.partialorder %v1026, 0.0
    %vm1045 = vcmp.gt.f32.partialorder %v1029, 0.0
    %v1046 = vmul.f32 %v978, 0.01
    %v1047 = vmul.f32 %v981, 0.01
    %v1048 = vmul.f32 %v986, 0.01
    %v1049 = vmul.f32 %v989, 0.01
    %v1050 = vmul.f32 %v994, 0.01
    %v1051 = vmul.f32 %v997, 0.01
    %v1052 = vmul.f32 %v1002, 0.01
    %v1053 = vmul.f32 %v1005, 0.01
    %v1054 = vmul.f32 %v1010, 0.01
    %v1055 = vmul.f32 %v1013, 0.01
    %v1056 = vmul.f32 %v1018, 0.01
    %v1057 = vmul.f32 %v1021, 0.01
    %v1058 = vmul.f32 %v1026, 0.01
    %v1059 = vmul.f32 %v1029, 0.01
    %v1060 = vsel %vm1032, %v978, %v1046
    %v1061 = vsel %vm1033, %v981, %v1047
    %v1062 = vsel %vm1034, %v986, %v1048
    %v1063 = vsel %vm1035, %v989, %v1049
    %v1064 = vsel %vm1036, %v994, %v1050
    %v1065 = vsel %vm1037, %v997, %v1051
    %v1066 = vsel %vm1038, %v1002, %v1052
    %v1067 = vsel %vm1039, %v1005, %v1053
    %v1068 = vsel %vm1040, %v1010, %v1054
    %v1069 = vsel %vm1041, %v1013, %v1055
    %v1070 = vsel %vm1042, %v1018, %v1056
    %v1071 = vsel %vm1043, %v1021, %v1057
    %v1072 = vsel %vm1044, %v1026, %v1058
    %v1073 = vsel %vm1045, %v1029, %v1059
    %v1074 = vpack.c.bf16 %v1061, %v1060
    %v1075 = vpack.c.bf16 %v1063, %v1062
    %v1076 = vpack.c.bf16 %v1065, %v1064
    %v1077 = vpack.c.bf16 %v1067, %v1066
    %v1078 = vpack.c.bf16 %v1069, %v1068
    %v1079 = vpack.c.bf16 %v1071, %v1070
    %v1080 = vpack.c.bf16 %v1073, %v1072
    %v1081 = vlaneseq
    %v1082 = vshrl.u32 %v1081, 7
    %v1083 = vsub.s32 0, %v1082
    %v1084 = vrot.slane %v755, %v1083
    %v1089 = vunpack.c.l.b16 %v750
    %v1090 = vunpack.c.l.b16 %v751
    %v1091 = vunpack.c.l.b16 %v752
    %v1092 = vunpack.c.l.b16 %v753
    %v1093 = vpack.c.b16 %v1090, %v1089
    %v1094 = vpack.c.b16 %v1092, %v1091
    %v1098 = vsel %vm179, %v1074, 0
    %v1101 = vsel %vm179, %v1075, 0
    %v1104 = vsel %vm179, %v1076, 0
    %v1107 = vsel %vm179, %v1077, 0
    %v1110 = vsel %vm179, %v1078, 0
    %v1113 = vsel %vm179, %v1079, 0
    %v1116 = vsel %vm179, %v1080, 0
    %1118 = vmatprep.subr.bf16.mxu0 0
    %1119 = vmatpush1.bf16.msra.mxu0 %v1093
    %1120 = vmatprep.subr.bf16.mxu0 0
    %1121 = vmatpush1.bf16.msra.mxu0 %v1094
    %1122 = vmatprep.subr.bf16.mxu0 0
    %1123 = vmatpush1.bf16.msra.mxu0 0
    %1124 = vmatprep.subr.bf16.mxu0 0
    %1125 = vmatpush1.bf16.msra.mxu0 0
    %1126 = vmatprep.subr.bf16.mxu0 0
    %1127 = vmatpush1.bf16.msra.mxu0 0
    %1128 = vmatprep.subr.bf16.mxu0 0
    %1129 = vmatpush1.bf16.msra.mxu0 0
    %1130 = vmatprep.subr.bf16.mxu0 0
    %1131 = vmatpush1.bf16.msra.mxu0 0
    %1132 = vmatprep.subr.bf16.mxu0 0
    %1133 = vmatpush1.bf16.msra.mxu0 0
    %1134 = vmatprep.subr.bf16.mxu0 0
    %1135 = vmatpush1.bf16.msra.mxu0 0
    %1136 = vmatprep.subr.bf16.mxu0 0
    %1137 = vmatpush1.bf16.msra.mxu0 0
    %1138 = vmatprep.subr.bf16.mxu0 0
    %1139 = vmatpush1.bf16.msra.mxu0 0
    %1140 = vmatprep.subr.bf16.mxu0 0
    %1141 = vmatpush1.bf16.msra.mxu0 0
    %1142 = vmatprep.subr.bf16.mxu0 0
    %1143 = vmatpush1.bf16.msra.mxu0 0
    %1144 = vmatprep.subr.bf16.mxu0 0
    %1145 = vmatpush1.bf16.msra.mxu0 0
    %1146 = vmatprep.subr.bf16.mxu0 0
    %1147 = vmatpush1.bf16.msra.mxu0 0
    %1148 = vmatprep.subr.bf16.mxu0 0
    %1149 = vmatpush1.bf16.msra.mxu0 0
    %1150 = vmatprep.mubr.bf16.mxu0 0
    %1151 = vmatmul.mubr.bf16.gmra.mrb[0].mxu0 %v1098
    %v1152 = vpop.f32.mrb[0].mxu0
    %v1153 = vadd.f32 %v1084, %v1152
    %v1154 = vpop.f32.mrb[0].mxu0
    %v1155 = vpop.f32.mrb[0].mxu0
    %v1156 = vadd.f32 %v1084, %v1155
    %v1157 = vpop.f32.mrb[0].mxu0
    %1158 = vmatprep.mubr.bf16.mxu0 0
    %1159 = vmatmul.mubr.bf16.gmra.mrb[0].mxu0 %v1101
    %v1160 = vpop.f32.mrb[0].mxu0
    %v1161 = vadd.f32 %v1084, %v1160
    %v1162 = vpop.f32.mrb[0].mxu0
    %v1163 = vpop.f32.mrb[0].mxu0
    %v1164 = vadd.f32 %v1084, %v1163
    %v1165 = vpop.f32.mrb[0].mxu0
    %1166 = vmatprep.mubr.bf16.mxu0 0
    %1167 = vmatmul.mubr.bf16.gmra.mrb[0].mxu0 %v1104
    %v1168 = vpop.f32.mrb[0].mxu0
    %v1169 = vadd.f32 %v1084, %v1168
    %v1170 = vpop.f32.mrb[0].mxu0
    %v1171 = vpop.f32.mrb[0].mxu0
    %v1172 = vadd.f32 %v1084, %v1171
    %v1173 = vpop.f32.mrb[0].mxu0
    %1174 = vmatprep.mubr.bf16.mxu0 0
    %1175 = vmatmul.mubr.bf16.gmra.mrb[0].mxu0 %v1107
    %v1176 = vpop.f32.mrb[0].mxu0
    %v1177 = vadd.f32 %v1084, %v1176
    %v1178 = vpop.f32.mrb[0].mxu0
    %v1179 = vpop.f32.mrb[0].mxu0
    %v1180 = vadd.f32 %v1084, %v1179
    %v1181 = vpop.f32.mrb[0].mxu0
    %1182 = vmatprep.mubr.bf16.mxu0 0
    %1183 = vmatmul.mubr.bf16.gmra.mrb[0].mxu0 %v1110
    %v1184 = vpop.f32.mrb[0].mxu0
    %v1185 = vadd.f32 %v1084, %v1184
    %v1186 = vpop.f32.mrb[0].mxu0
    %v1187 = vpop.f32.mrb[0].mxu0
    %v1188 = vadd.f32 %v1084, %v1187
    %v1189 = vpop.f32.mrb[0].mxu0
    %1190 = vmatprep.mubr.bf16.mxu0 0
    %1191 = vmatmul.mubr.bf16.gmra.mrb[0].mxu0 %v1113
    %v1192 = vpop.f32.mrb[0].mxu0
    %v1193 = vadd.f32 %v1084, %v1192
    %v1194 = vpop.f32.mrb[0].mxu0
    %v1195 = vpop.f32.mrb[0].mxu0
    %v1196 = vadd.f32 %v1084, %v1195
    %v1197 = vpop.f32.mrb[0].mxu0
    %1198 = vmatprep.mubr.bf16.mxu0 0
    %1199 = vmatmul.mubr.bf16.gmra.mrb[0].mxu0 %v1116
    %v1200 = vpop.f32.mrb[0].mxu0
    %v1201 = vadd.f32 %v1084, %v1200
    %v1202 = vpop.f32.mrb[0].mxu0
    %v1203 = vpop.f32.mrb[0].mxu0
    %v1204 = vadd.f32 %v1084, %v1203
    %v1205 = vpop.f32.mrb[0].mxu0
    %1206 = vdwg.mxu0
    %vm1207 = vcmp.gt.f32.partialorder %v1153, 0.0
    %vm1208 = vcmp.gt.f32.partialorder %v1156, 0.0
    %vm1209 = vcmp.gt.f32.partialorder %v1161, 0.0
    %vm1210 = vcmp.gt.f32.partialorder %v1164, 0.0
    %vm1211 = vcmp.gt.f32.partialorder %v1169, 0.0
    %vm1212 = vcmp.gt.f32.partialorder %v1172, 0.0
    %vm1213 = vcmp.gt.f32.partialorder %v1177, 0.0
    %vm1214 = vcmp.gt.f32.partialorder %v1180, 0.0
    %vm1215 = vcmp.gt.f32.partialorder %v1185, 0.0
    %vm1216 = vcmp.gt.f32.partialorder %v1188, 0.0
    %vm1217 = vcmp.gt.f32.partialorder %v1193, 0.0
    %vm1218 = vcmp.gt.f32.partialorder %v1196, 0.0
    %vm1219 = vcmp.gt.f32.partialorder %v1201, 0.0
    %vm1220 = vcmp.gt.f32.partialorder %v1204, 0.0
    %v1221 = vmul.f32 %v1153, 0.01
    %v1222 = vmul.f32 %v1156, 0.01
    %v1223 = vmul.f32 %v1161, 0.01
    %v1224 = vmul.f32 %v1164, 0.01
    %v1225 = vmul.f32 %v1169, 0.01
    %v1226 = vmul.f32 %v1172, 0.01
    %v1227 = vmul.f32 %v1177, 0.01
    %v1228 = vmul.f32 %v1180, 0.01
    %v1229 = vmul.f32 %v1185, 0.01
    %v1230 = vmul.f32 %v1188, 0.01
    %v1231 = vmul.f32 %v1193, 0.01
    %v1232 = vmul.f32 %v1196, 0.01
    %v1233 = vmul.f32 %v1201, 0.01
    %v1234 = vmul.f32 %v1204, 0.01
    %v1235 = vsel %vm1207, %v1153, %v1221
    %v1236 = vsel %vm1208, %v1156, %v1222
    %v1237 = vsel %vm1209, %v1161, %v1223
    %v1238 = vsel %vm1210, %v1164, %v1224
    %v1239 = vsel %vm1211, %v1169, %v1225
    %v1240 = vsel %vm1212, %v1172, %v1226
    %v1241 = vsel %vm1213, %v1177, %v1227
    %v1242 = vsel %vm1214, %v1180, %v1228
    %v1243 = vsel %vm1215, %v1185, %v1229
    %v1244 = vsel %vm1216, %v1188, %v1230
    %v1245 = vsel %vm1217, %v1193, %v1231
    %v1246 = vsel %vm1218, %v1196, %v1232
    %v1247 = vsel %vm1219, %v1201, %v1233
    %v1248 = vsel %vm1220, %v1204, %v1234
    %v1249 = vpack.c.bf16 %v1236, %v1235
    %v1250 = vpack.c.bf16 %v1238, %v1237
    %v1251 = vpack.c.bf16 %v1240, %v1239
    %v1252 = vpack.c.bf16 %v1242, %v1241
    %v1253 = vpack.c.bf16 %v1244, %v1243
    %v1254 = vpack.c.bf16 %v1246, %v1245
    %v1255 = vpack.c.bf16 %v1248, %v1247
    %v1256 = vld [vmem:[#allocation2 + $0x70] sm:$0xf]
    %v1257 = vld [vmem:[#allocation2 + $0x74] sm:$0xf]
    %v1258 = vld [vmem:[#allocation2 + $0x78] sm:$0xf]
    %v1259 = vld [vmem:[#allocation2 + $0x7c] sm:$0xf]
    %v1260 = vld [vmem:[#allocation2 + $0x80] sm:$0xf]
    %v1261 = vld [vmem:[#allocation2 + $0x84] sm:$0xf]
    %v1262 = vld [vmem:[#allocation2 + $0x88] sm:$0xf]
    %v1263 = vld [vmem:[#allocation2 + $0x8c] sm:$0xf]
    %v1264 = vld [vmem:[#allocation2 + $0x90] sm:$0xf]
    %v1265 = vld [vmem:[#allocation2 + $0x98] sm:$0xf]
    %v1266 = vld [vmem:[#allocation2 + $0x9c] sm:$0xf]
    %v1267 = vld [vmem:[#allocation2 + $0xa0] sm:$0xf]
    %v1268 = vld [vmem:[#allocation2 + $0xa4] sm:$0xf]
    %v1269 = vld [vmem:[%s2 + $0x4] sm:$0x1]
    %v1270 = vld [vmem:[%s2 + $0x5] sm:$0x1]
    %v1272 = vshrl.u32 %v1249, 16
    %v1274 = vrot.slane %v1272, 1
    %v1275 = vshll.u32 %v1249, 16
    %v1277 = vrot.slane %v1275, 2
    %v1278 = vor.u32 %v1274, %v1277
    %v1280 = vshrl.u32 %v1250, 16
    %v1282 = vrot.slane %v1280, 1
    %v1283 = vshll.u32 %v1250, 16
    %v1285 = vrot.slane %v1283, 2
    %v1286 = vor.u32 %v1282, %v1285
    %v1287 = vsel %vm130, %v1278, %v1286
    %v1289 = vshrl.u32 %v1251, 16
    %v1291 = vrot.slane %v1289, 1
    %v1292 = vshll.u32 %v1251, 16
    %v1294 = vrot.slane %v1292, 2
    %v1295 = vor.u32 %v1291, %v1294
    %v1296 = vsel %vm130, %v1286, %v1295
    %v1298 = vshrl.u32 %v1252, 16
    %v1300 = vrot.slane %v1298, 1
    %v1301 = vshll.u32 %v1252, 16
    %v1303 = vrot.slane %v1301, 2
    %v1304 = vor.u32 %v1300, %v1303
    %v1305 = vsel %vm130, %v1295, %v1304
    %1306 = vrot.lane.b32.xlu0 %v1287, 24
    %v1307 = vpop.permute.xlu0 %1306
    %1308 = vrot.lane.b32.xlu0 %v1296, 24
    %v1309 = vpop.permute.xlu0 %1308
    %1310 = vrot.lane.b32.xlu0 %v1305, 24
    %v1311 = vpop.permute.xlu0 %1310
    %1312 = vrot.lane.b32.xlu0 %v1304, 24
    %v1313 = vpop.permute.xlu0 %1312
    %vm1318 = vcmask 1044480
    %v1319 = vrot.slane %v1249, 3
    %v1320 = vrot.slane %v1250, 3
    %v1321 = vsel %vm1318, %v1319, %v1320
    %v1322 = vrot.slane %v1251, 3
    %v1323 = vsel %vm1318, %v1320, %v1322
    %v1324 = vrot.slane %v1252, 3
    %v1325 = vsel %vm1318, %v1322, %v1324
    %1326 = vrot.lane.b32.xlu0 %v1321, 48
    %v1327 = vpop.permute.xlu0 %1326
    %1328 = vrot.lane.b32.xlu0 %v1323, 48
    %v1329 = vpop.permute.xlu0 %1328
    %1330 = vrot.lane.b32.xlu0 %v1325, 48
    %v1331 = vpop.permute.xlu0 %1330
    %1332 = vrot.lane.b32.xlu0 %v1324, 48
    %v1333 = vpop.permute.xlu0 %1332
    %v1335 = vsel %vm790, %v1249, %v1307
    %v1337 = vsel %vm790, %v1250, %v1309
    %v1339 = vsel %vm790, %v1251, %v1311
    %v1341 = vsel %vm790, %v1252, %v1313
    %v1343 = vsel %vm188, %v1335, %v1327
    %v1345 = vsel %vm188, %v1337, %v1329
    %v1347 = vsel %vm188, %v1339, %v1331
    %v1349 = vsel %vm188, %v1341, %v1333
    %v1351 = vshrl.u32 %v1253, 16
    %v1353 = vrot.slane %v1351, 1
    %v1354 = vshll.u32 %v1253, 16
    %v1356 = vrot.slane %v1354, 2
    %v1357 = vor.u32 %v1353, %v1356
    %v1358 = vsel %vm130, %v1304, %v1357
    %v1360 = vshrl.u32 %v1254, 16
    %v1362 = vrot.slane %v1360, 1
    %v1363 = vshll.u32 %v1254, 16
    %v1365 = vrot.slane %v1363, 2
    %v1366 = vor.u32 %v1362, %v1365
    %v1367 = vsel %vm130, %v1357, %v1366
    %v1369 = vshrl.u32 %v1255, 16
    %v1371 = vrot.slane %v1369, 1
    %v1372 = vshll.u32 %v1255, 16
    %v1374 = vrot.slane %v1372, 2
    %v1375 = vor.u32 %v1371, %v1374
    %v1376 = vsel %vm130, %v1366, %v1375
    %1377 = vrot.lane.b32.xlu0 %v1358, 24
    %v1378 = vpop.permute.xlu0 %1377
    %1379 = vrot.lane.b32.xlu0 %v1367, 24
    %v1380 = vpop.permute.xlu0 %1379
    %1381 = vrot.lane.b32.xlu0 %v1376, 24
    %v1382 = vpop.permute.xlu0 %1381
    %1383 = vrot.lane.b32.xlu0 %v1375, 24
    %v1384 = vpop.permute.xlu0 %1383
    %v1388 = vrot.slane %v1253, 3
    %v1389 = vsel %vm1318, %v1324, %v1388
    %v1390 = vrot.slane %v1254, 3
    %v1391 = vsel %vm1318, %v1388, %v1390
    %v1392 = vrot.slane %v1255, 3
    %v1393 = vsel %vm1318, %v1390, %v1392
    %1394 = vrot.lane.b32.xlu0 %v1389, 48
    %v1395 = vpop.permute.xlu0 %1394
    %1396 = vrot.lane.b32.xlu0 %v1391, 48
    %v1397 = vpop.permute.xlu0 %1396
    %1398 = vrot.lane.b32.xlu0 %v1393, 48
    %v1399 = vpop.permute.xlu0 %1398
    %1400 = vrot.lane.b32.xlu0 %v1392, 48
    %v1401 = vpop.permute.xlu0 %1400
    %v1403 = vsel %vm790, %v1252, %v1378
    %v1405 = vsel %vm790, %v1253, %v1380
    %v1407 = vsel %vm790, %v1254, %v1382
    %v1409 = vsel %vm790, %v1255, %v1384
    %v1411 = vsel %vm188, %v1403, %v1395
    %v1413 = vsel %vm188, %v1405, %v1397
    %v1415 = vsel %vm188, %v1407, %v1399
    %v1417 = vsel %vm188, %v1409, %v1401
    %v1422 = vrot.slane %v1411, 3
    %v1423 = vrot.slane %v1413, 3
    %v1424 = vsel %vm1318, %v1422, %v1423
    %v1425 = vrot.slane %v1415, 3
    %v1426 = vsel %vm1318, %v1423, %v1425
    %v1427 = vrot.slane %v1417, 3
    %v1428 = vsel %vm1318, %v1425, %v1427
    %vm1429 = vcmask 1040384
    %v1431 = vsel %vm1429, %v1349, %v1424
    %v1432 = vlaneseq
    %v1433 = vshrl.u32 %v1432, 7
    %v1434 = vsub.s32 0, %v1433
    %v1435 = vrot.slane %v1269, %v1434
    %v1445 = vunpack.c.l.b16 %v1256
    %v1446 = vunpack.c.l.b16 %v1257
    %v1447 = vunpack.c.l.b16 %v1258
    %v1448 = vunpack.c.l.b16 %v1259
    %v1449 = vunpack.c.l.b16 %v1260
    %v1450 = vunpack.c.l.b16 %v1261
    %v1451 = vunpack.c.l.b16 %v1262
    %v1452 = vunpack.c.l.b16 %v1263
    %v1453 = vunpack.c.l.b16 %v1264
    %v1454 = vpack.c.b16 %v1446, %v1445
    %v1455 = vpack.c.b16 %v1448, %v1447
    %v1456 = vpack.c.b16 %v1450, %v1449
    %v1457 = vpack.c.b16 %v1452, %v1451
    %v1458 = vpack.c.b16 %v1453, %v1453
    %v1463 = vsel %vm922, %v1343, 0
    %v1465 = vsel %vm922, %v1345, 0
    %v1467 = vsel %vm922, %v1347, 0
    %v1469 = vsel %vm922, %v1431, 0
    %v1472 = vsel %vm922, %v1426, 0
    %v1475 = vsel %vm922, %v1428, 0
    %v1478 = vsel %vm922, %v1427, 0
    %v1481 = vsel %vm888, %v1458, 0
    %1483 = vmatprep.subr.bf16.mxu0 0
    %1484 = vmatpush1.bf16.msra.mxu0 %v1454
    %1485 = vmatprep.subr.bf16.mxu0 0
    %1486 = vmatpush1.bf16.msra.mxu0 %v1455
    %1487 = vmatprep.subr.bf16.mxu0 0
    %1488 = vmatpush1.bf16.msra.mxu0 %v1456
    %1489 = vmatprep.subr.bf16.mxu0 0
    %1490 = vmatpush1.bf16.msra.mxu0 %v1457
    %1491 = vmatprep.subr.bf16.mxu0 0
    %1492 = vmatpush1.bf16.msra.mxu0 %v1481
    %1493 = vmatprep.subr.bf16.mxu0 0
    %1494 = vmatpush1.bf16.msra.mxu0 0
    %1495 = vmatprep.subr.bf16.mxu0 0
    %1496 = vmatpush1.bf16.msra.mxu0 0
    %1497 = vmatprep.subr.bf16.mxu0 0
    %1498 = vmatpush1.bf16.msra.mxu0 0
    %1499 = vmatprep.subr.bf16.mxu0 0
    %1500 = vmatpush1.bf16.msra.mxu0 0
    %1501 = vmatprep.subr.bf16.mxu0 0
    %1502 = vmatpush1.bf16.msra.mxu0 0
    %1503 = vmatprep.subr.bf16.mxu0 0
    %1504 = vmatpush1.bf16.msra.mxu0 0
    %1505 = vmatprep.subr.bf16.mxu0 0
    %1506 = vmatpush1.bf16.msra.mxu0 0
    %1507 = vmatprep.subr.bf16.mxu0 0
    %1508 = vmatpush1.bf16.msra.mxu0 0
    %1509 = vmatprep.subr.bf16.mxu0 0
    %1510 = vmatpush1.bf16.msra.mxu0 0
    %1511 = vmatprep.subr.bf16.mxu0 0
    %1512 = vmatpush1.bf16.msra.mxu0 0
    %1513 = vmatprep.subr.bf16.mxu0 0
    %1514 = vmatpush1.bf16.msra.mxu0 0
    %1515 = vmatprep.mubr.bf16.mxu0 0
    %1516 = vmatmul.mubr.bf16.gmra.mrb[0].mxu0 %v1463
    %v1517 = vpop.f32.mrb[0].mxu0
    %v1518 = vadd.f32 %v1435, %v1517
    %v1519 = vpop.f32.mrb[0].mxu0
    %v1520 = vpop.f32.mrb[0].mxu0
    %v1521 = vadd.f32 %v1435, %v1520
    %v1522 = vpop.f32.mrb[0].mxu0
    %1523 = vmatprep.mubr.bf16.mxu0 0
    %1524 = vmatmul.mubr.bf16.gmra.mrb[0].mxu0 %v1465
    %v1525 = vpop.f32.mrb[0].mxu0
    %v1526 = vadd.f32 %v1435, %v1525
    %v1527 = vpop.f32.mrb[0].mxu0
    %v1528 = vpop.f32.mrb[0].mxu0
    %v1529 = vadd.f32 %v1435, %v1528
    %v1530 = vpop.f32.mrb[0].mxu0
    %1531 = vmatprep.mubr.bf16.mxu0 0
    %1532 = vmatmul.mubr.bf16.gmra.mrb[0].mxu0 %v1467
    %v1533 = vpop.f32.mrb[0].mxu0
    %v1534 = vadd.f32 %v1435, %v1533
    %v1535 = vpop.f32.mrb[0].mxu0
    %v1536 = vpop.f32.mrb[0].mxu0
    %v1537 = vadd.f32 %v1435, %v1536
    %v1538 = vpop.f32.mrb[0].mxu0
    %1539 = vmatprep.mubr.bf16.mxu0 0
    %1540 = vmatmul.mubr.bf16.gmra.mrb[0].mxu0 %v1469
    %v1541 = vpop.f32.mrb[0].mxu0
    %v1542 = vadd.f32 %v1435, %v1541
    %v1543 = vpop.f32.mrb[0].mxu0
    %v1544 = vpop.f32.mrb[0].mxu0
    %v1545 = vadd.f32 %v1435, %v1544
    %v1546 = vpop.f32.mrb[0].mxu0
    %1547 = vmatprep.mubr.bf16.mxu0 0
    %1548 = vmatmul.mubr.bf16.gmra.mrb[0].mxu0 %v1472
    %v1549 = vpop.f32.mrb[0].mxu0
    %v1550 = vadd.f32 %v1435, %v1549
    %v1551 = vpop.f32.mrb[0].mxu0
    %v1552 = vpop.f32.mrb[0].mxu0
    %v1553 = vadd.f32 %v1435, %v1552
    %v1554 = vpop.f32.mrb[0].mxu0
    %1555 = vmatprep.mubr.bf16.mxu0 0
    %1556 = vmatmul.mubr.bf16.gmra.mrb[0].mxu0 %v1475
    %v1557 = vpop.f32.mrb[0].mxu0
    %v1558 = vadd.f32 %v1435, %v1557
    %v1559 = vpop.f32.mrb[0].mxu0
    %v1560 = vpop.f32.mrb[0].mxu0
    %v1561 = vadd.f32 %v1435, %v1560
    %v1562 = vpop.f32.mrb[0].mxu0
    %1563 = vmatprep.mubr.bf16.mxu0 0
    %1564 = vmatmul.mubr.bf16.gmra.mrb[0].mxu0 %v1478
    %v1565 = vpop.f32.mrb[0].mxu0
    %v1566 = vadd.f32 %v1435, %v1565
    %v1567 = vpop.f32.mrb[0].mxu0
    %v1568 = vpop.f32.mrb[0].mxu0
    %v1569 = vpop.f32.mrb[0].mxu0
    %1570 = vdwg.mxu0
    %vm1571 = vcmp.gt.f32.partialorder %v1518, 0.0
    %vm1572 = vcmp.gt.f32.partialorder %v1521, 0.0
    %vm1573 = vcmp.gt.f32.partialorder %v1526, 0.0
    %vm1574 = vcmp.gt.f32.partialorder %v1529, 0.0
    %vm1575 = vcmp.gt.f32.partialorder %v1534, 0.0
    %vm1576 = vcmp.gt.f32.partialorder %v1537, 0.0
    %vm1577 = vcmp.gt.f32.partialorder %v1542, 0.0
    %vm1578 = vcmp.gt.f32.partialorder %v1545, 0.0
    %vm1579 = vcmp.gt.f32.partialorder %v1550, 0.0
    %vm1580 = vcmp.gt.f32.partialorder %v1553, 0.0
    %vm1581 = vcmp.gt.f32.partialorder %v1558, 0.0
    %vm1582 = vcmp.gt.f32.partialorder %v1561, 0.0
    %vm1583 = vcmp.gt.f32.partialorder %v1566, 0.0
    %v1584 = vmul.f32 %v1518, 0.01
    %v1585 = vmul.f32 %v1521, 0.01
    %v1586 = vmul.f32 %v1526, 0.01
    %v1587 = vmul.f32 %v1529, 0.01
    %v1588 = vmul.f32 %v1534, 0.01
    %v1589 = vmul.f32 %v1537, 0.01
    %v1590 = vmul.f32 %v1542, 0.01
    %v1591 = vmul.f32 %v1545, 0.01
    %v1592 = vmul.f32 %v1550, 0.01
    %v1593 = vmul.f32 %v1553, 0.01
    %v1594 = vmul.f32 %v1558, 0.01
    %v1595 = vmul.f32 %v1561, 0.01
    %v1596 = vmul.f32 %v1566, 0.01
    %v1597 = vsel %vm1571, %v1518, %v1584
    %v1598 = vsel %vm1572, %v1521, %v1585
    %v1599 = vsel %vm1573, %v1526, %v1586
    %v1600 = vsel %vm1574, %v1529, %v1587
    %v1601 = vsel %vm1575, %v1534, %v1588
    %v1602 = vsel %vm1576, %v1537, %v1589
    %v1603 = vsel %vm1577, %v1542, %v1590
    %v1604 = vsel %vm1578, %v1545, %v1591
    %v1605 = vsel %vm1579, %v1550, %v1592
    %v1606 = vsel %vm1580, %v1553, %v1593
    %v1607 = vsel %vm1581, %v1558, %v1594
    %v1608 = vsel %vm1582, %v1561, %v1595
    %v1609 = vsel %vm1583, %v1566, %v1596
    %v1610 = vpack.c.bf16 %v1598, %v1597
    %v1611 = vpack.c.bf16 %v1600, %v1599
    %v1612 = vpack.c.bf16 %v1602, %v1601
    %v1613 = vpack.c.bf16 %v1604, %v1603
    %v1614 = vpack.c.bf16 %v1606, %v1605
    %v1615 = vpack.c.bf16 %v1608, %v1607
    %v1616 = vpack.c.bf16 %v1609, %v1609
    %v1617 = vlaneseq
    %v1618 = vshrl.u32 %v1617, 7
    %v1619 = vsub.s32 0, %v1618
    %v1620 = vrot.slane %v1270, %v1619
    %v1625 = vunpack.c.l.b16 %v1265
    %v1626 = vunpack.c.l.b16 %v1266
    %v1627 = vunpack.c.l.b16 %v1267
    %v1628 = vunpack.c.l.b16 %v1268
    %v1629 = vpack.c.b16 %v1626, %v1625
    %v1630 = vpack.c.b16 %v1628, %v1627
    %v1634 = vsel %vm179, %v1610, 0
    %v1637 = vsel %vm179, %v1611, 0
    %v1640 = vsel %vm179, %v1612, 0
    %v1643 = vsel %vm179, %v1613, 0
    %v1646 = vsel %vm179, %v1614, 0
    %v1649 = vsel %vm179, %v1615, 0
    %v1652 = vsel %vm179, %v1616, 0
    %1654 = vmatprep.subr.bf16.mxu0 0
    %1655 = vmatpush1.bf16.msra.mxu0 %v1629
    %1656 = vmatprep.subr.bf16.mxu0 0
    %1657 = vmatpush1.bf16.msra.mxu0 %v1630
    %1658 = vmatprep.subr.bf16.mxu0 0
    %1659 = vmatpush1.bf16.msra.mxu0 0
    %1660 = vmatprep.subr.bf16.mxu0 0
    %1661 = vmatpush1.bf16.msra.mxu0 0
    %1662 = vmatprep.subr.bf16.mxu0 0
    %1663 = vmatpush1.bf16.msra.mxu0 0
    %1664 = vmatprep.subr.bf16.mxu0 0
    %1665 = vmatpush1.bf16.msra.mxu0 0
    %1666 = vmatprep.subr.bf16.mxu0 0
    %1667 = vmatpush1.bf16.msra.mxu0 0
    %1668 = vmatprep.subr.bf16.mxu0 0
    %1669 = vmatpush1.bf16.msra.mxu0 0
    %1670 = vmatprep.subr.bf16.mxu0 0
    %1671 = vmatpush1.bf16.msra.mxu0 0
    %1672 = vmatprep.subr.bf16.mxu0 0
    %1673 = vmatpush1.bf16.msra.mxu0 0
    %1674 = vmatprep.subr.bf16.mxu0 0
    %1675 = vmatpush1.bf16.msra.mxu0 0
    %1676 = vmatprep.subr.bf16.mxu0 0
    %1677 = vmatpush1.bf16.msra.mxu0 0
    %1678 = vmatprep.subr.bf16.mxu0 0
    %1679 = vmatpush1.bf16.msra.mxu0 0
    %1680 = vmatprep.subr.bf16.mxu0 0
    %1681 = vmatpush1.bf16.msra.mxu0 0
    %1682 = vmatprep.subr.bf16.mxu0 0
    %1683 = vmatpush1.bf16.msra.mxu0 0
    %1684 = vmatprep.subr.bf16.mxu0 0
    %1685 = vmatpush1.bf16.msra.mxu0 0
    %1686 = vmatprep.mubr.bf16.mxu0 0
    %1687 = vmatmul.mubr.bf16.gmra.mrb[0].mxu0 %v1634
    %v1688 = vpop.f32.mrb[0].mxu0
    %v1689 = vadd.f32 %v1620, %v1688
    %v1690 = vpop.f32.mrb[0].mxu0
    %v1691 = vpop.f32.mrb[0].mxu0
    %v1692 = vadd.f32 %v1620, %v1691
    %v1693 = vpop.f32.mrb[0].mxu0
    %1694 = vmatprep.mubr.bf16.mxu0 0
    %1695 = vmatmul.mubr.bf16.gmra.mrb[0].mxu0 %v1637
    %v1696 = vpop.f32.mrb[0].mxu0
    %v1697 = vadd.f32 %v1620, %v1696
    %v1698 = vpop.f32.mrb[0].mxu0
    %v1699 = vpop.f32.mrb[0].mxu0
    %v1700 = vadd.f32 %v1620, %v1699
    %v1701 = vpop.f32.mrb[0].mxu0
    %1702 = vmatprep.mubr.bf16.mxu0 0
    %1703 = vmatmul.mubr.bf16.gmra.mrb[0].mxu0 %v1640
    %v1704 = vpop.f32.mrb[0].mxu0
    %v1705 = vadd.f32 %v1620, %v1704
    %v1706 = vpop.f32.mrb[0].mxu0
    %v1707 = vpop.f32.mrb[0].mxu0
    %v1708 = vadd.f32 %v1620, %v1707
    %v1709 = vpop.f32.mrb[0].mxu0
    %1710 = vmatprep.mubr.bf16.mxu0 0
    %1711 = vmatmul.mubr.bf16.gmra.mrb[0].mxu0 %v1643
    %v1712 = vpop.f32.mrb[0].mxu0
    %v1713 = vadd.f32 %v1620, %v1712
    %v1714 = vpop.f32.mrb[0].mxu0
    %v1715 = vpop.f32.mrb[0].mxu0
    %v1716 = vadd.f32 %v1620, %v1715
    %v1717 = vpop.f32.mrb[0].mxu0
    %1718 = vmatprep.mubr.bf16.mxu0 0
    %1719 = vmatmul.mubr.bf16.gmra.mrb[0].mxu0 %v1646
    %v1720 = vpop.f32.mrb[0].mxu0
    %v1721 = vadd.f32 %v1620, %v1720
    %v1722 = vpop.f32.mrb[0].mxu0
    %v1723 = vpop.f32.mrb[0].mxu0
    %v1724 = vadd.f32 %v1620, %v1723
    %v1725 = vpop.f32.mrb[0].mxu0
    %1726 = vmatprep.mubr.bf16.mxu0 0
    %1727 = vmatmul.mubr.bf16.gmra.mrb[0].mxu0 %v1649
    %v1728 = vpop.f32.mrb[0].mxu0
    %v1729 = vadd.f32 %v1620, %v1728
    %v1730 = vpop.f32.mrb[0].mxu0
    %v1731 = vpop.f32.mrb[0].mxu0
    %v1732 = vadd.f32 %v1620, %v1731
    %v1733 = vpop.f32.mrb[0].mxu0
    %1734 = vmatprep.mubr.bf16.mxu0 0
    %1735 = vmatmul.mubr.bf16.gmra.mrb[0].mxu0 %v1652
    %v1736 = vpop.f32.mrb[0].mxu0
    %v1737 = vadd.f32 %v1620, %v1736
    %v1738 = vpop.f32.mrb[0].mxu0
    %v1739 = vpop.f32.mrb[0].mxu0
    %v1740 = vpop.f32.mrb[0].mxu0
    %1741 = vdwg.mxu0
    %vm1742 = vcmp.gt.f32.partialorder %v1689, 0.0
    %vm1743 = vcmp.gt.f32.partialorder %v1692, 0.0
    %vm1744 = vcmp.gt.f32.partialorder %v1697, 0.0
    %vm1745 = vcmp.gt.f32.partialorder %v1700, 0.0
    %vm1746 = vcmp.gt.f32.partialorder %v1705, 0.0
    %vm1747 = vcmp.gt.f32.partialorder %v1708, 0.0
    %vm1748 = vcmp.gt.f32.partialorder %v1713, 0.0
    %vm1749 = vcmp.gt.f32.partialorder %v1716, 0.0
    %vm1750 = vcmp.gt.f32.partialorder %v1721, 0.0
    %vm1751 = vcmp.gt.f32.partialorder %v1724, 0.0
    %vm1752 = vcmp.gt.f32.partialorder %v1729, 0.0
    %vm1753 = vcmp.gt.f32.partialorder %v1732, 0.0
    %vm1754 = vcmp.gt.f32.partialorder %v1737, 0.0
    %v1755 = vmul.f32 %v1689, 0.01
    %v1756 = vmul.f32 %v1692, 0.01
    %v1757 = vmul.f32 %v1697, 0.01
    %v1758 = vmul.f32 %v1700, 0.01
    %v1759 = vmul.f32 %v1705, 0.01
    %v1760 = vmul.f32 %v1708, 0.01
    %v1761 = vmul.f32 %v1713, 0.01
    %v1762 = vmul.f32 %v1716, 0.01
    %v1763 = vmul.f32 %v1721, 0.01
    %v1764 = vmul.f32 %v1724, 0.01
    %v1765 = vmul.f32 %v1729, 0.01
    %v1766 = vmul.f32 %v1732, 0.01
    %v1767 = vmul.f32 %v1737, 0.01
    %v1768 = vsel %vm1742, %v1689, %v1755
    %v1769 = vsel %vm1743, %v1692, %v1756
    %v1770 = vsel %vm1744, %v1697, %v1757
    %v1771 = vsel %vm1745, %v1700, %v1758
    %v1772 = vsel %vm1746, %v1705, %v1759
    %v1773 = vsel %vm1747, %v1708, %v1760
    %v1774 = vsel %vm1748, %v1713, %v1761
    %v1775 = vsel %vm1749, %v1716, %v1762
    %v1776 = vsel %vm1750, %v1721, %v1763
    %v1777 = vsel %vm1751, %v1724, %v1764
    %v1778 = vsel %vm1752, %v1729, %v1765
    %v1779 = vsel %vm1753, %v1732, %v1766
    %v1780 = vsel %vm1754, %v1737, %v1767
    %v1781 = vpack.c.bf16 %v1769, %v1768
    %v1782 = vpack.c.bf16 %v1771, %v1770
    %v1783 = vpack.c.bf16 %v1773, %v1772
    %v1784 = vpack.c.bf16 %v1775, %v1774
    %v1785 = vpack.c.bf16 %v1777, %v1776
    %v1786 = vpack.c.bf16 %v1779, %v1778
    %v1787 = vpack.c.bf16 %v1780, %v1780
    %v1788 = vld [vmem:[#allocation2 + $0xa8] sm:$0xf]
    %v1789 = vld [vmem:[#allocation2 + $0xac] sm:$0xf]
    %v1790 = vld [vmem:[#allocation2 + $0xb0] sm:$0xf]
    %v1791 = vld [vmem:[#allocation2 + $0xb4] sm:$0xf]
    %v1792 = vld [vmem:[#allocation2 + $0xb8] sm:$0xf]
    %v1793 = vld [vmem:[#allocation2 + $0xbc] sm:$0xf]
    %v1794 = vld [vmem:[#allocation2 + $0xc0] sm:$0xf]
    %v1795 = vld [vmem:[#allocation2 + $0xc4] sm:$0xf]
    %v1796 = vld [vmem:[#allocation2 + $0xc8] sm:$0xf]
    %v1797 = vld [vmem:[#allocation2 + $0xd0] sm:$0xf]
    %v1798 = vld [vmem:[#allocation2 + $0xd4] sm:$0xf]
    %v1799 = vld [vmem:[#allocation2 + $0xd8] sm:$0xf]
    %v1800 = vld [vmem:[#allocation2 + $0xdc] sm:$0xf]
    %v1801 = vld [vmem:[%s2 + $0x6] sm:$0x1]
    %v1802 = vld [vmem:[%s2 + $0x7] sm:$0x1]
    %v1806 = vrot.slane %v1781, 2
    %v1807 = vrot.slane %v1782, 2
    %v1808 = vsel %vm154, %v1806, %v1807
    %v1809 = vrot.slane %v1783, 2
    %v1810 = vsel %vm154, %v1807, %v1809
    %1811 = vrot.lane.b32.xlu0 %v1808, 24
    %v1812 = vpop.permute.xlu0 %1811
    %1813 = vrot.lane.b32.xlu0 %v1810, 24
    %v1814 = vpop.permute.xlu0 %1813
    %1815 = vrot.lane.b32.xlu0 %v1809, 24
    %v1816 = vpop.permute.xlu0 %1815
    %vm1818 = vcmask 1043456
    %v1819 = vrot.slane %v1781, 4
    %v1820 = vrot.slane %v1782, 4
    %v1821 = vsel %vm1818, %v1819, %v1820
    %v1822 = vrot.slane %v1783, 4
    %v1823 = vsel %vm1818, %v1820, %v1822
    %v1824 = vrot.slane %v1784, 4
    %v1825 = vsel %vm1818, %v1822, %v1824
    %1826 = vrot.lane.b32.xlu0 %v1821, 48
    %v1827 = vpop.permute.xlu0 %1826
    %1828 = vrot.lane.b32.xlu0 %v1823, 48
    %v1829 = vpop.permute.xlu0 %1828
    %1830 = vrot.lane.b32.xlu0 %v1825, 48
    %v1831 = vpop.permute.xlu0 %1830
    %v1834 = vsel %vm790, %v1781, %v1812
    %v1837 = vsel %vm790, %v1782, %v1814
    %v1840 = vsel %vm790, %v1783, %v1816
    %v1842 = vsel %vm188, %v1834, %v1827
    %v1844 = vsel %vm188, %v1837, %v1829
    %v1846 = vsel %vm188, %v1840, %v1831
    %v1849 = vrot.slane %v1784, 2
    %v1850 = vrot.slane %v1785, 2
    %v1851 = vsel %vm154, %v1849, %v1850
    %v1852 = vrot.slane %v1786, 2
    %v1853 = vsel %vm154, %v1850, %v1852
    %1854 = vrot.lane.b32.xlu0 %v1851, 24
    %v1855 = vpop.permute.xlu0 %1854
    %1856 = vrot.lane.b32.xlu0 %v1853, 24
    %v1857 = vpop.permute.xlu0 %1856
    %1858 = vrot.lane.b32.xlu0 %v1852, 24
    %v1859 = vpop.permute.xlu0 %1858
    %v1861 = vrot.slane %v1785, 4
    %v1862 = vsel %vm1818, %v1824, %v1861
    %v1863 = vrot.slane %v1786, 4
    %v1864 = vsel %vm1818, %v1861, %v1863
    %v1865 = vrot.slane %v1787, 4
    %v1866 = vsel %vm1818, %v1863, %v1865
    %1867 = vrot.lane.b32.xlu0 %v1862, 48
    %v1868 = vpop.permute.xlu0 %1867
    %1869 = vrot.lane.b32.xlu0 %v1864, 48
    %v1870 = vpop.permute.xlu0 %1869
    %1871 = vrot.lane.b32.xlu0 %v1866, 48
    %v1872 = vpop.permute.xlu0 %1871
    %v1875 = vsel %vm790, %v1784, %v1855
    %v1878 = vsel %vm790, %v1785, %v1857
    %v1881 = vsel %vm790, %v1786, %v1859
    %v1883 = vsel %vm188, %v1875, %v1868
    %v1885 = vsel %vm188, %v1878, %v1870
    %v1887 = vsel %vm188, %v1881, %v1872
    %v1891 = vrot.slane %v1883, 4
    %v1892 = vrot.slane %v1885, 4
    %v1893 = vsel %vm1818, %v1891, %v1892
    %v1894 = vrot.slane %v1887, 4
    %v1895 = vsel %vm1818, %v1892, %v1894
    %vm1896 = vcmask 1044480
    %v1898 = vsel %vm1896, %v1846, %v1891
    %v1899 = vlaneseq
    %v1900 = vshrl.u32 %v1899, 7
    %v1901 = vsub.s32 0, %v1900
    %v1902 = vrot.slane %v1801, %v1901
    %v1912 = vunpack.c.l.b16 %v1788
    %v1913 = vunpack.c.l.b16 %v1789
    %v1914 = vunpack.c.l.b16 %v1790
    %v1915 = vunpack.c.l.b16 %v1791
    %v1916 = vunpack.c.l.b16 %v1792
    %v1917 = vunpack.c.l.b16 %v1793
    %v1918 = vunpack.c.l.b16 %v1794
    %v1919 = vunpack.c.l.b16 %v1795
    %v1920 = vunpack.c.l.b16 %v1796
    %v1921 = vpack.c.b16 %v1913, %v1912
    %v1922 = vpack.c.b16 %v1915, %v1914
    %v1923 = vpack.c.b16 %v1917, %v1916
    %v1924 = vpack.c.b16 %v1919, %v1918
    %v1925 = vpack.c.b16 %v1920, %v1920
    %v1930 = vsel %vm922, %v1842, 0
    %v1932 = vsel %vm922, %v1844, 0
    %v1934 = vsel %vm922, %v1898, 0
    %v1937 = vsel %vm922, %v1893, 0
    %v1940 = vsel %vm922, %v1895, 0
    %v1943 = vsel %vm922, %v1894, 0
    %v1946 = vsel %vm888, %v1925, 0
    %1948 = vmatprep.subr.bf16.mxu0 0
    %1949 = vmatpush1.bf16.msra.mxu0 %v1921
    %1950 = vmatprep.subr.bf16.mxu0 0
    %1951 = vmatpush1.bf16.msra.mxu0 %v1922
    %1952 = vmatprep.subr.bf16.mxu0 0
    %1953 = vmatpush1.bf16.msra.mxu0 %v1923
    %1954 = vmatprep.subr.bf16.mxu0 0
    %1955 = vmatpush1.bf16.msra.mxu0 %v1924
    %1956 = vmatprep.subr.bf16.mxu0 0
    %1957 = vmatpush1.bf16.msra.mxu0 %v1946
    %1958 = vmatprep.subr.bf16.mxu0 0
    %1959 = vmatpush1.bf16.msra.mxu0 0
    %1960 = vmatprep.subr.bf16.mxu0 0
    %1961 = vmatpush1.bf16.msra.mxu0 0
    %1962 = vmatprep.subr.bf16.mxu0 0
    %1963 = vmatpush1.bf16.msra.mxu0 0
    %1964 = vmatprep.subr.bf16.mxu0 0
    %1965 = vmatpush1.bf16.msra.mxu0 0
    %1966 = vmatprep.subr.bf16.mxu0 0
    %1967 = vmatpush1.bf16.msra.mxu0 0
    %1968 = vmatprep.subr.bf16.mxu0 0
    %1969 = vmatpush1.bf16.msra.mxu0 0
    %1970 = vmatprep.subr.bf16.mxu0 0
    %1971 = vmatpush1.bf16.msra.mxu0 0
    %1972 = vmatprep.subr.bf16.mxu0 0
    %1973 = vmatpush1.bf16.msra.mxu0 0
    %1974 = vmatprep.subr.bf16.mxu0 0
    %1975 = vmatpush1.bf16.msra.mxu0 0
    %1976 = vmatprep.subr.bf16.mxu0 0
    %1977 = vmatpush1.bf16.msra.mxu0 0
    %1978 = vmatprep.subr.bf16.mxu0 0
    %1979 = vmatpush1.bf16.msra.mxu0 0
    %1980 = vmatprep.mubr.bf16.mxu0 0
    %1981 = vmatmul.mubr.bf16.gmra.mrb[0].mxu0 %v1930
    %v1982 = vpop.f32.mrb[0].mxu0
    %v1983 = vadd.f32 %v1902, %v1982
    %v1984 = vpop.f32.mrb[0].mxu0
    %v1985 = vpop.f32.mrb[0].mxu0
    %v1986 = vadd.f32 %v1902, %v1985
    %v1987 = vpop.f32.mrb[0].mxu0
    %1988 = vmatprep.mubr.bf16.mxu0 0
    %1989 = vmatmul.mubr.bf16.gmra.mrb[0].mxu0 %v1932
    %v1990 = vpop.f32.mrb[0].mxu0
    %v1991 = vadd.f32 %v1902, %v1990
    %v1992 = vpop.f32.mrb[0].mxu0
    %v1993 = vpop.f32.mrb[0].mxu0
    %v1994 = vadd.f32 %v1902, %v1993
    %v1995 = vpop.f32.mrb[0].mxu0
    %1996 = vmatprep.mubr.bf16.mxu0 0
    %1997 = vmatmul.mubr.bf16.gmra.mrb[0].mxu0 %v1934
    %v1998 = vpop.f32.mrb[0].mxu0
    %v1999 = vadd.f32 %v1902, %v1998
    %v2000 = vpop.f32.mrb[0].mxu0
    %v2001 = vpop.f32.mrb[0].mxu0
    %v2002 = vadd.f32 %v1902, %v2001
    %v2003 = vpop.f32.mrb[0].mxu0
    %2004 = vmatprep.mubr.bf16.mxu0 0
    %2005 = vmatmul.mubr.bf16.gmra.mrb[0].mxu0 %v1937
    %v2006 = vpop.f32.mrb[0].mxu0
    %v2007 = vadd.f32 %v1902, %v2006
    %v2008 = vpop.f32.mrb[0].mxu0
    %v2009 = vpop.f32.mrb[0].mxu0
    %v2010 = vadd.f32 %v1902, %v2009
    %v2011 = vpop.f32.mrb[0].mxu0
    %2012 = vmatprep.mubr.bf16.mxu0 0
    %2013 = vmatmul.mubr.bf16.gmra.mrb[0].mxu0 %v1940
    %v2014 = vpop.f32.mrb[0].mxu0
    %v2015 = vadd.f32 %v1902, %v2014
    %v2016 = vpop.f32.mrb[0].mxu0
    %v2017 = vpop.f32.mrb[0].mxu0
    %v2018 = vadd.f32 %v1902, %v2017
    %v2019 = vpop.f32.mrb[0].mxu0
    %2020 = vmatprep.mubr.bf16.mxu0 0
    %2021 = vmatmul.mubr.bf16.gmra.mrb[0].mxu0 %v1943
    %v2022 = vpop.f32.mrb[0].mxu0
    %v2023 = vadd.f32 %v1902, %v2022
    %v2024 = vpop.f32.mrb[0].mxu0
    %v2025 = vpop.f32.mrb[0].mxu0
    %v2026 = vpop.f32.mrb[0].mxu0
    %2027 = vdwg.mxu0
    %vm2028 = vcmp.gt.f32.partialorder %v1983, 0.0
    %vm2029 = vcmp.gt.f32.partialorder %v1986, 0.0
    %vm2030 = vcmp.gt.f32.partialorder %v1991, 0.0
    %vm2031 = vcmp.gt.f32.partialorder %v1994, 0.0
    %vm2032 = vcmp.gt.f32.partialorder %v1999, 0.0
    %vm2033 = vcmp.gt.f32.partialorder %v2002, 0.0
    %vm2034 = vcmp.gt.f32.partialorder %v2007, 0.0
    %vm2035 = vcmp.gt.f32.partialorder %v2010, 0.0
    %vm2036 = vcmp.gt.f32.partialorder %v2015, 0.0
    %vm2037 = vcmp.gt.f32.partialorder %v2018, 0.0
    %vm2038 = vcmp.gt.f32.partialorder %v2023, 0.0
    %v2039 = vmul.f32 %v1983, 0.01
    %v2040 = vmul.f32 %v1986, 0.01
    %v2041 = vmul.f32 %v1991, 0.01
    %v2042 = vmul.f32 %v1994, 0.01
    %v2043 = vmul.f32 %v1999, 0.01
    %v2044 = vmul.f32 %v2002, 0.01
    %v2045 = vmul.f32 %v2007, 0.01
    %v2046 = vmul.f32 %v2010, 0.01
    %v2047 = vmul.f32 %v2015, 0.01
    %v2048 = vmul.f32 %v2018, 0.01
    %v2049 = vmul.f32 %v2023, 0.01
    %v2050 = vsel %vm2028, %v1983, %v2039
    %v2051 = vsel %vm2029, %v1986, %v2040
    %v2052 = vsel %vm2030, %v1991, %v2041
    %v2053 = vsel %vm2031, %v1994, %v2042
    %v2054 = vsel %vm2032, %v1999, %v2043
    %v2055 = vsel %vm2033, %v2002, %v2044
    %v2056 = vsel %vm2034, %v2007, %v2045
    %v2057 = vsel %vm2035, %v2010, %v2046
    %v2058 = vsel %vm2036, %v2015, %v2047
    %v2059 = vsel %vm2037, %v2018, %v2048
    %v2060 = vsel %vm2038, %v2023, %v2049
    %v2061 = vpack.c.bf16 %v2051, %v2050
    %v2062 = vpack.c.bf16 %v2053, %v2052
    %v2063 = vpack.c.bf16 %v2055, %v2054
    %v2064 = vpack.c.bf16 %v2057, %v2056
    %v2065 = vpack.c.bf16 %v2059, %v2058
    %v2066 = vpack.c.bf16 %v2060, %v2060
    %v2067 = vlaneseq
    %v2068 = vshrl.u32 %v2067, 7
    %v2069 = vsub.s32 0, %v2068
    %v2070 = vrot.slane %v1802, %v2069
    %v2075 = vunpack.c.l.b16 %v1797
    %v2076 = vunpack.c.l.b16 %v1798
    %v2077 = vunpack.c.l.b16 %v1799
    %v2078 = vunpack.c.l.b16 %v1800
    %v2079 = vpack.c.b16 %v2076, %v2075
    %v2080 = vpack.c.b16 %v2078, %v2077
    %v2084 = vsel %vm179, %v2061, 0
    %v2087 = vsel %vm179, %v2062, 0
    %v2090 = vsel %vm179, %v2063, 0
    %v2093 = vsel %vm179, %v2064, 0
    %v2096 = vsel %vm179, %v2065, 0
    %v2099 = vsel %vm179, %v2066, 0
    %2101 = vmatprep.subr.bf16.mxu0 0
    %2102 = vmatpush1.bf16.msra.mxu0 %v2079
    %2103 = vmatprep.subr.bf16.mxu0 0
    %2104 = vmatpush1.bf16.msra.mxu0 %v2080
    %2105 = vmatprep.subr.bf16.mxu0 0
    %2106 = vmatpush1.bf16.msra.mxu0 0
    %2107 = vmatprep.subr.bf16.mxu0 0
    %2108 = vmatpush1.bf16.msra.mxu0 0
    %2109 = vmatprep.subr.bf16.mxu0 0
    %2110 = vmatpush1.bf16.msra.mxu0 0
    %2111 = vmatprep.subr.bf16.mxu0 0
    %2112 = vmatpush1.bf16.msra.mxu0 0
    %2113 = vmatprep.subr.bf16.mxu0 0
    %2114 = vmatpush1.bf16.msra.mxu0 0
    %2115 = vmatprep.subr.bf16.mxu0 0
    %2116 = vmatpush1.bf16.msra.mxu0 0
    %2117 = vmatprep.subr.bf16.mxu0 0
    %2118 = vmatpush1.bf16.msra.mxu0 0
    %2119 = vmatprep.subr.bf16.mxu0 0
    %2120 = vmatpush1.bf16.msra.mxu0 0
    %2121 = vmatprep.subr.bf16.mxu0 0
    %2122 = vmatpush1.bf16.msra.mxu0 0
    %2123 = vmatprep.subr.bf16.mxu0 0
    %2124 = vmatpush1.bf16.msra.mxu0 0
    %2125 = vmatprep.subr.bf16.mxu0 0
    %2126 = vmatpush1.bf16.msra.mxu0 0
    %2127 = vmatprep.subr.bf16.mxu0 0
    %2128 = vmatpush1.bf16.msra.mxu0 0
    %2129 = vmatprep.subr.bf16.mxu0 0
    %2130 = vmatpush1.bf16.msra.mxu0 0
    %2131 = vmatprep.subr.bf16.mxu0 0
    %2132 = vmatpush1.bf16.msra.mxu0 0
    %2133 = vmatprep.mubr.bf16.mxu0 0
    %2134 = vmatmul.mubr.bf16.gmra.mrb[0].mxu0 %v2084
    %v2135 = vpop.f32.mrb[0].mxu0
    %v2136 = vadd.f32 %v2070, %v2135
    %v2137 = vpop.f32.mrb[0].mxu0
    %v2138 = vpop.f32.mrb[0].mxu0
    %v2139 = vadd.f32 %v2070, %v2138
    %v2140 = vpop.f32.mrb[0].mxu0
    %2141 = vmatprep.mubr.bf16.mxu0 0
    %2142 = vmatmul.mubr.bf16.gmra.mrb[0].mxu0 %v2087
    %v2143 = vpop.f32.mrb[0].mxu0
    %v2144 = vadd.f32 %v2070, %v2143
    %v2145 = vpop.f32.mrb[0].mxu0
    %v2146 = vpop.f32.mrb[0].mxu0
    %v2147 = vadd.f32 %v2070, %v2146
    %v2148 = vpop.f32.mrb[0].mxu0
    %2149 = vmatprep.mubr.bf16.mxu0 0
    %2150 = vmatmul.mubr.bf16.gmra.mrb[0].mxu0 %v2090
    %v2151 = vpop.f32.mrb[0].mxu0
    %v2152 = vadd.f32 %v2070, %v2151
    %v2153 = vpop.f32.mrb[0].mxu0
    %v2154 = vpop.f32.mrb[0].mxu0
    %v2155 = vadd.f32 %v2070, %v2154
    %v2156 = vpop.f32.mrb[0].mxu0
    %2157 = vmatprep.mubr.bf16.mxu0 0
    %2158 = vmatmul.mubr.bf16.gmra.mrb[0].mxu0 %v2093
    %v2159 = vpop.f32.mrb[0].mxu0
    %v2160 = vadd.f32 %v2070, %v2159
    %v2161 = vpop.f32.mrb[0].mxu0
    %v2162 = vpop.f32.mrb[0].mxu0
    %v2163 = vadd.f32 %v2070, %v2162
    %v2164 = vpop.f32.mrb[0].mxu0
    %2165 = vmatprep.mubr.bf16.mxu0 0
    %2166 = vmatmul.mubr.bf16.gmra.mrb[0].mxu0 %v2096
    %v2167 = vpop.f32.mrb[0].mxu0
    %v2168 = vadd.f32 %v2070, %v2167
    %v2169 = vpop.f32.mrb[0].mxu0
    %v2170 = vpop.f32.mrb[0].mxu0
    %v2171 = vadd.f32 %v2070, %v2170
    %v2172 = vpop.f32.mrb[0].mxu0
    %2173 = vmatprep.mubr.bf16.mxu0 0
    %2174 = vmatmul.mubr.bf16.gmra.mrb[0].mxu0 %v2099
    %v2175 = vpop.f32.mrb[0].mxu0
    %v2176 = vadd.f32 %v2070, %v2175
    %v2177 = vpop.f32.mrb[0].mxu0
    %v2178 = vpop.f32.mrb[0].mxu0
    %v2179 = vpop.f32.mrb[0].mxu0
    %2180 = vdwg.mxu0
    %vm2181 = vcmp.gt.f32.partialorder %v2136, 0.0
    %vm2182 = vcmp.gt.f32.partialorder %v2139, 0.0
    %vm2183 = vcmp.gt.f32.partialorder %v2144, 0.0
    %vm2184 = vcmp.gt.f32.partialorder %v2147, 0.0
    %vm2185 = vcmp.gt.f32.partialorder %v2152, 0.0
    %vm2186 = vcmp.gt.f32.partialorder %v2155, 0.0
    %vm2187 = vcmp.gt.f32.partialorder %v2160, 0.0
    %vm2188 = vcmp.gt.f32.partialorder %v2163, 0.0
    %vm2189 = vcmp.gt.f32.partialorder %v2168, 0.0
    %vm2190 = vcmp.gt.f32.partialorder %v2171, 0.0
    %vm2191 = vcmp.gt.f32.partialorder %v2176, 0.0
    %v2192 = vmul.f32 %v2136, 0.01
    %v2193 = vmul.f32 %v2139, 0.01
    %v2194 = vmul.f32 %v2144, 0.01
    %v2195 = vmul.f32 %v2147, 0.01
    %v2196 = vmul.f32 %v2152, 0.01
    %v2197 = vmul.f32 %v2155, 0.01
    %v2198 = vmul.f32 %v2160, 0.01
    %v2199 = vmul.f32 %v2163, 0.01
    %v2200 = vmul.f32 %v2168, 0.01
    %v2201 = vmul.f32 %v2171, 0.01
    %v2202 = vmul.f32 %v2176, 0.01
    %v2203 = vsel %vm2181, %v2136, %v2192
    %v2204 = vsel %vm2182, %v2139, %v2193
    %v2205 = vsel %vm2183, %v2144, %v2194
    %v2206 = vsel %vm2184, %v2147, %v2195
    %v2207 = vsel %vm2185, %v2152, %v2196
    %v2208 = vsel %vm2186, %v2155, %v2197
    %v2209 = vsel %vm2187, %v2160, %v2198
    %v2210 = vsel %vm2188, %v2163, %v2199
    %v2211 = vsel %vm2189, %v2168, %v2200
    %v2212 = vsel %vm2190, %v2171, %v2201
    %v2213 = vsel %vm2191, %v2176, %v2202
    %v2214 = vpack.c.bf16 %v2204, %v2203
    %v2215 = vpack.c.bf16 %v2206, %v2205
    %v2216 = vpack.c.bf16 %v2208, %v2207
    %v2217 = vpack.c.bf16 %v2210, %v2209
    %v2218 = vpack.c.bf16 %v2212, %v2211
    %v2219 = vpack.c.bf16 %v2213, %v2213
    %v2220 = vld [vmem:[#allocation2 + $0xe0] sm:$0xf]
    %v2221 = vld [vmem:[#allocation2 + $0xe4] sm:$0xf]
    %v2222 = vld [vmem:[#allocation2 + $0xe8] sm:$0xf]
    %v2223 = vld [vmem:[#allocation2 + $0xec] sm:$0xf]
    %v2224 = vld [vmem:[%s2 + $0x8] sm:$0x1]
    %v2225 = vlaneseq
    %v2226 = vshrl.u32 %v2225, 7
    %v2227 = vsub.s32 0, %v2226
    %v2228 = vrot.slane %v2224, %v2227
    %v2233 = vunpack.c.l.b16 %v2220
    %v2234 = vunpack.c.l.b16 %v2221
    %v2235 = vunpack.c.l.b16 %v2222
    %v2236 = vunpack.c.l.b16 %v2223
    %v2237 = vpack.c.b16 %v2234, %v2233
    %v2238 = vpack.c.b16 %v2236, %v2235
    %v2242 = vsel %vm179, %v2214, 0
    %v2245 = vsel %vm179, %v2215, 0
    %v2248 = vsel %vm179, %v2216, 0
    %v2251 = vsel %vm179, %v2217, 0
    %v2254 = vsel %vm179, %v2218, 0
    %v2257 = vsel %vm179, %v2219, 0
    %2259 = vmatprep.subr.bf16.mxu0 0
    %2260 = vmatpush1.bf16.msra.mxu0 %v2237
    %2261 = vmatprep.subr.bf16.mxu0 0
    %2262 = vmatpush1.bf16.msra.mxu0 %v2238
    %2263 = vmatprep.subr.bf16.mxu0 0
    %2264 = vmatpush1.bf16.msra.mxu0 0
    %2265 = vmatprep.subr.bf16.mxu0 0
    %2266 = vmatpush1.bf16.msra.mxu0 0
    %2267 = vmatprep.subr.bf16.mxu0 0
    %2268 = vmatpush1.bf16.msra.mxu0 0
    %2269 = vmatprep.subr.bf16.mxu0 0
    %2270 = vmatpush1.bf16.msra.mxu0 0
    %2271 = vmatprep.subr.bf16.mxu0 0
    %2272 = vmatpush1.bf16.msra.mxu0 0
    %2273 = vmatprep.subr.bf16.mxu0 0
    %2274 = vmatpush1.bf16.msra.mxu0 0
    %2275 = vmatprep.subr.bf16.mxu0 0
    %2276 = vmatpush1.bf16.msra.mxu0 0
    %2277 = vmatprep.subr.bf16.mxu0 0
    %2278 = vmatpush1.bf16.msra.mxu0 0
    %2279 = vmatprep.subr.bf16.mxu0 0
    %2280 = vmatpush1.bf16.msra.mxu0 0
    %2281 = vmatprep.subr.bf16.mxu0 0
    %2282 = vmatpush1.bf16.msra.mxu0 0
    %2283 = vmatprep.subr.bf16.mxu0 0
    %2284 = vmatpush1.bf16.msra.mxu0 0
    %2285 = vmatprep.subr.bf16.mxu0 0
    %2286 = vmatpush1.bf16.msra.mxu0 0
    %2287 = vmatprep.subr.bf16.mxu0 0
    %2288 = vmatpush1.bf16.msra.mxu0 0
    %2289 = vmatprep.subr.bf16.mxu0 0
    %2290 = vmatpush1.bf16.msra.mxu0 0
    %2291 = vmatprep.mubr.bf16.mxu0 0
    %2292 = vmatmul.mubr.bf16.gmra.mrb[0].mxu0 %v2242
    %v2293 = vpop.f32.mrb[0].mxu0
    %v2294 = vadd.f32 %v2228, %v2293
    %v2295 = vpop.f32.mrb[0].mxu0
    %v2296 = vpop.f32.mrb[0].mxu0
    %v2297 = vadd.f32 %v2228, %v2296
    %v2298 = vpop.f32.mrb[0].mxu0
    %2299 = vmatprep.mubr.bf16.mxu0 0
    %2300 = vmatmul.mubr.bf16.gmra.mrb[0].mxu0 %v2245
    %v2301 = vpop.f32.mrb[0].mxu0
    %v2302 = vadd.f32 %v2228, %v2301
    %v2303 = vpop.f32.mrb[0].mxu0
    %v2304 = vpop.f32.mrb[0].mxu0
    %v2305 = vadd.f32 %v2228, %v2304
    %v2306 = vpop.f32.mrb[0].mxu0
    %2307 = vmatprep.mubr.bf16.mxu0 0
    %2308 = vmatmul.mubr.bf16.gmra.mrb[0].mxu0 %v2248
    %v2309 = vpop.f32.mrb[0].mxu0
    %v2310 = vadd.f32 %v2228, %v2309
    %v2311 = vpop.f32.mrb[0].mxu0
    %v2312 = vpop.f32.mrb[0].mxu0
    %v2313 = vadd.f32 %v2228, %v2312
    %v2314 = vpop.f32.mrb[0].mxu0
    %2315 = vmatprep.mubr.bf16.mxu0 0
    %2316 = vmatmul.mubr.bf16.gmra.mrb[0].mxu0 %v2251
    %v2317 = vpop.f32.mrb[0].mxu0
    %v2318 = vadd.f32 %v2228, %v2317
    %v2319 = vpop.f32.mrb[0].mxu0
    %v2320 = vpop.f32.mrb[0].mxu0
    %v2321 = vadd.f32 %v2228, %v2320
    %v2322 = vpop.f32.mrb[0].mxu0
    %2323 = vmatprep.mubr.bf16.mxu0 0
    %2324 = vmatmul.mubr.bf16.gmra.mrb[0].mxu0 %v2254
    %v2325 = vpop.f32.mrb[0].mxu0
    %v2326 = vadd.f32 %v2228, %v2325
    %v2327 = vpop.f32.mrb[0].mxu0
    %v2328 = vpop.f32.mrb[0].mxu0
    %v2329 = vadd.f32 %v2228, %v2328
    %v2330 = vpop.f32.mrb[0].mxu0
    %2331 = vmatprep.mubr.bf16.mxu0 0
    %2332 = vmatmul.mubr.bf16.gmra.mrb[0].mxu0 %v2257
    %v2333 = vpop.f32.mrb[0].mxu0
    %v2334 = vadd.f32 %v2228, %v2333
    %v2335 = vpop.f32.mrb[0].mxu0
    %v2336 = vpop.f32.mrb[0].mxu0
    %v2337 = vpop.f32.mrb[0].mxu0
    %2338 = vdwg.mxu0
    %vm2339 = vcmp.gt.f32.partialorder %v2294, 0.0
    %vm2340 = vcmp.gt.f32.partialorder %v2297, 0.0
    %vm2341 = vcmp.gt.f32.partialorder %v2302, 0.0
    %vm2342 = vcmp.gt.f32.partialorder %v2305, 0.0
    %vm2343 = vcmp.gt.f32.partialorder %v2310, 0.0
    %vm2344 = vcmp.gt.f32.partialorder %v2313, 0.0
    %vm2345 = vcmp.gt.f32.partialorder %v2318, 0.0
    %vm2346 = vcmp.gt.f32.partialorder %v2321, 0.0
    %vm2347 = vcmp.gt.f32.partialorder %v2326, 0.0
    %vm2348 = vcmp.gt.f32.partialorder %v2329, 0.0
    %vm2349 = vcmp.gt.f32.partialorder %v2334, 0.0
    %v2350 = vmul.f32 %v2294, 0.01
    %v2351 = vmul.f32 %v2297, 0.01
    %v2352 = vmul.f32 %v2302, 0.01
    %v2353 = vmul.f32 %v2305, 0.01
    %v2354 = vmul.f32 %v2310, 0.01
    %v2355 = vmul.f32 %v2313, 0.01
    %v2356 = vmul.f32 %v2318, 0.01
    %v2357 = vmul.f32 %v2321, 0.01
    %v2358 = vmul.f32 %v2326, 0.01
    %v2359 = vmul.f32 %v2329, 0.01
    %v2360 = vmul.f32 %v2334, 0.01
    %v2361 = vsel %vm2339, %v2294, %v2350
    %v2362 = vsel %vm2340, %v2297, %v2351
    %v2363 = vsel %vm2341, %v2302, %v2352
    %v2364 = vsel %vm2342, %v2305, %v2353
    %v2365 = vsel %vm2343, %v2310, %v2354
    %v2366 = vsel %vm2344, %v2313, %v2355
    %v2367 = vsel %vm2345, %v2318, %v2356
    %v2368 = vsel %vm2346, %v2321, %v2357
    %v2369 = vsel %vm2347, %v2326, %v2358
    %v2370 = vsel %vm2348, %v2329, %v2359
    %v2371 = vsel %vm2349, %v2334, %v2360
    %vm2372 = vcmask 785408
    %v2373 = vsel %vm2372, %v2361, 0.0
    %v2374 = vsel %vm2372, %v2362, 0.0
    %v2375 = vadd.f32 %v2373, %v2374
    %v2376 = vsel %vm2372, %v2363, 0.0
    %v2377 = vadd.f32 %v2375, %v2376
    %v2378 = vsel %vm2372, %v2364, 0.0
    %v2379 = vadd.f32 %v2377, %v2378
    %v2380 = vsel %vm2372, %v2365, 0.0
    %v2381 = vadd.f32 %v2379, %v2380
    %vm2382 = vcmask 779264
    %v2383 = vsel %vm2382, %v2366, 0.0
    %v2384 = vadd.f32 %v2381, %v2383
    %v2385 = vrot.slane %v2384, 4
    %v2386 = vadd.f32 %v2384, %v2385
    %v2387 = vrot.slane %v2386, 2
    %v2388 = vadd.f32 %v2386, %v2387
    %v2389 = vrot.slane %v2388, 1
    %v2390 = vadd.f32 %v2388, %v2389
    %v2391 = vrcp.pop 42.0
    %v2392 = vmul.f32 %v2390, %v2391
    %v2399 = vrot.slane %v2366, 2
    %v2400 = vrot.slane %v2367, 2
    %v2401 = vsel %vm345, %v2399, %v2400
    %v2402 = vrot.slane %v2368, 2
    %v2403 = vsel %vm345, %v2400, %v2402
    %v2404 = vrot.slane %v2369, 2
    %v2405 = vsel %vm345, %v2402, %v2404
    %v2406 = vrot.slane %v2370, 2
    %v2407 = vsel %vm345, %v2404, %v2406
    %v2408 = vrot.slane %v2371, 2
    %v2409 = vsel %vm345, %v2406, %v2408
    %v2416 = vsel %vm2372, %v2401, 0.0
    %v2417 = vsel %vm2372, %v2403, 0.0
    %v2418 = vadd.f32 %v2416, %v2417
    %v2419 = vsel %vm2372, %v2405, 0.0
    %v2420 = vadd.f32 %v2418, %v2419
    %v2421 = vsel %vm2372, %v2407, 0.0
    %v2422 = vadd.f32 %v2420, %v2421
    %v2423 = vsel %vm2372, %v2409, 0.0
    %v2424 = vadd.f32 %v2422, %v2423
    %v2425 = vsel %vm2382, %v2408, 0.0
    %v2426 = vadd.f32 %v2424, %v2425
    %v2427 = vrot.slane %v2426, 4
    %v2428 = vadd.f32 %v2426, %v2427
    %v2429 = vrot.slane %v2428, 2
    %v2430 = vadd.f32 %v2428, %v2429
    %v2431 = vrot.slane %v2430, 1
    %v2432 = vadd.f32 %v2430, %v2431
    %v2433 = vmul.f32 %v2432, %v2391
    %v2434 = vsub.f32 %v2361, %v2392
    %v2435 = vsub.f32 %v2362, %v2392
    %v2436 = vsub.f32 %v2363, %v2392
    %v2437 = vsub.f32 %v2364, %v2392
    %v2438 = vsub.f32 %v2365, %v2392
    %v2439 = vsub.f32 %v2366, %v2392
    %v2440 = vsub.f32 %v2366, %v2433
    %v2441 = vsub.f32 %v2367, %v2433
    %v2442 = vsub.f32 %v2368, %v2433
    %v2443 = vsub.f32 %v2369, %v2433
    %v2444 = vsub.f32 %v2370, %v2433
    %v2445 = vsub.f32 %v2371, %v2433
    %v2446 = vmul.f32 %v2434, %v2434
    %v2447 = vmul.f32 %v2435, %v2435
    %v2448 = vmul.f32 %v2436, %v2436
    %v2449 = vmul.f32 %v2437, %v2437
    %v2450 = vmul.f32 %v2438, %v2438
    %v2451 = vmul.f32 %v2439, %v2439
    %v2452 = vsel %vm2372, %v2446, 0.0
    %v2453 = vsel %vm2372, %v2447, 0.0
    %v2454 = vadd.f32 %v2452, %v2453
    %v2455 = vsel %vm2372, %v2448, 0.0
    %v2456 = vadd.f32 %v2454, %v2455
    %v2457 = vsel %vm2372, %v2449, 0.0
    %v2458 = vadd.f32 %v2456, %v2457
    %v2459 = vsel %vm2372, %v2450, 0.0
    %v2460 = vadd.f32 %v2458, %v2459
    %v2461 = vsel %vm2382, %v2451, 0.0
    %v2462 = vadd.f32 %v2460, %v2461
    %v2463 = vrot.slane %v2462, 4
    %v2464 = vadd.f32 %v2462, %v2463
    %v2465 = vrot.slane %v2464, 2
    %v2466 = vadd.f32 %v2464, %v2465
    %v2467 = vrot.slane %v2466, 1
    %v2468 = vadd.f32 %v2466, %v2467
    %v2469 = vmul.f32 %v2468, %v2391
    %v2470 = vadd.f32 %v2469, 1e-09
    %v2471 = vrsqrt.pop %v2470
    %v2472 = vmul.f32 %v2470, %v2471
    %vm2473 = vcmp.eq.f32.partialorder %v2470, inf
    %v2474 = vsel %vm2473, %v2470, %v2472
    %vm2475 = vcmp.eq.f32.partialorder %v2470, 0.0
    %v2476 = vand.u32 %v2470, 2147483648
    %v2477 = vsel %vm2475, %v2476, %v2474
    %v2478 = vmul.f32 %v2440, %v2440
    %v2479 = vmul.f32 %v2441, %v2441
    %v2480 = vmul.f32 %v2442, %v2442
    %v2481 = vmul.f32 %v2443, %v2443
    %v2482 = vmul.f32 %v2444, %v2444
    %v2483 = vmul.f32 %v2445, %v2445
    %v2490 = vrot.slane %v2478, 2
    %v2491 = vrot.slane %v2479, 2
    %v2492 = vsel %vm345, %v2490, %v2491
    %v2493 = vrot.slane %v2480, 2
    %v2494 = vsel %vm345, %v2491, %v2493
    %v2495 = vrot.slane %v2481, 2
    %v2496 = vsel %vm345, %v2493, %v2495
    %v2497 = vrot.slane %v2482, 2
    %v2498 = vsel %vm345, %v2495, %v2497
    %v2499 = vrot.slane %v2483, 2
    %v2500 = vsel %vm345, %v2497, %v2499
    %v2507 = vsel %vm2372, %v2492, 0.0
    %v2508 = vsel %vm2372, %v2494, 0.0
    %v2509 = vadd.f32 %v2507, %v2508
    %v2510 = vsel %vm2372, %v2496, 0.0
    %v2511 = vadd.f32 %v2509, %v2510
    %v2512 = vsel %vm2372, %v2498, 0.0
    %v2513 = vadd.f32 %v2511, %v2512
    %v2514 = vsel %vm2372, %v2500, 0.0
    %v2515 = vadd.f32 %v2513, %v2514
    %v2516 = vsel %vm2382, %v2499, 0.0
    %v2517 = vadd.f32 %v2515, %v2516
    %v2518 = vrot.slane %v2517, 4
    %v2519 = vadd.f32 %v2517, %v2518
    %v2520 = vrot.slane %v2519, 2
    %v2521 = vadd.f32 %v2519, %v2520
    %v2522 = vrot.slane %v2521, 1
    %v2523 = vadd.f32 %v2521, %v2522
    %v2524 = vmul.f32 %v2523, %v2391
    %v2525 = vadd.f32 %v2524, 1e-09
    %v2526 = vrsqrt.pop %v2525
    %v2527 = vmul.f32 %v2525, %v2526
    %vm2528 = vcmp.eq.f32.partialorder %v2525, inf
    %v2529 = vsel %vm2528, %v2525, %v2527
    %vm2530 = vcmp.eq.f32.partialorder %v2525, 0.0
    %v2531 = vand.u32 %v2525, 2147483648
    %v2532 = vsel %vm2530, %v2531, %v2529
    %2534 = vrot.lane.b32.xlu0 %v2477, 96
    %v2535 = vpop.permute.xlu0 %2534
    %v2537 = vsel %vm2372, %v2392, %v2535
    %2539 = vrot.lane.b32.xlu0 %v2532, 96
    %v2540 = vpop.permute.xlu0 %2539
    %v2542 = vsel %vm2372, %v2433, %v2540
    %v2544 = vrot.slane %v2542, 7
    %v2545 = vrot.slane %v2540, 7
    %v2548 = vsel %vm1429, %v2537, %v2544
    %v2549 = vsel %vm1429, %v2535, %v2545
    %v2550 = vpack.c.bf16 %v2548, %v2548
    %v2551 = vpack.c.bf16 %v2549, %v2549
    %v2552 = vld [vmem:[#allocation2 + $0xf0] sm:$0xf]
    %v2553 = vld [vmem:[#allocation2 + $0xf4] sm:$0xf]
    %v2554 = vld [vmem:[#allocation2 + $0xf8] sm:$0xf]
    %v2555 = vld [vmem:[#allocation2 + $0xfc] sm:$0xf]
    %v2556 = vld [vmem:[#allocation2 + $0x100] sm:$0xf]
    %v2557 = vld [vmem:[#allocation2 + $0x104] sm:$0xf]
    %v2558 = vld [vmem:[#allocation2 + $0x108] sm:$0xf]
    %v2559 = vld [vmem:[#allocation2 + $0x10c] sm:$0xf]
    %v2560 = vld [vmem:[#allocation2 + $0x110] sm:$0xf]
    %v2561 = vld [vmem:[#allocation2 + $0x114] sm:$0xf]
    %v2562 = vld [vmem:[#allocation2 + $0x118] sm:$0xf]
    %v2563 = vld [vmem:[#allocation2 + $0x11c] sm:$0xf]
    %v2564 = vld [vmem:[#allocation2 + $0x120] sm:$0xf]
    %v2565 = vld [vmem:[#allocation2 + $0x124] sm:$0xf]
    %v2566 = vld [vmem:[#allocation2 + $0x128] sm:$0xf]
    %v2567 = vld [vmem:[#allocation2 + $0x12c] sm:$0xf]
    %v2568 = vld [vmem:[#allocation2 + $0x130] sm:$0xf]
    %v2569 = vld [vmem:[#allocation2 + $0x134] sm:$0xf]
    %v2570 = vld [vmem:[#allocation2 + $0x138] sm:$0xf]
    %v2571 = vld [vmem:[#allocation2 + $0x13c] sm:$0xf]
    %v2572 = vld [vmem:[#allocation2 + $0x140] sm:$0xf]
    %v2573 = vld [vmem:[#allocation2 + $0x144] sm:$0xf]
    %v2574 = vld [vmem:[#allocation2 + $0x148] sm:$0xf]
    %v2575 = vld [vmem:[#allocation2 + $0x14c] sm:$0xf]
    %v2576 = vld [vmem:[%s2 + $0x9] sm:$0x1]
    %v2577 = vlaneseq
    %v2578 = vshrl.u32 %v2577, 7
    %v2579 = vsub.s32 0, %v2578
    %v2580 = vrot.slane %v2576, %v2579
    %v2605 = vunpack.c.l.b16 %v2552
    %v2606 = vunpack.c.l.b16 %v2553
    %v2607 = vunpack.c.l.b16 %v2554
    %v2608 = vunpack.c.l.b16 %v2555
    %v2609 = vunpack.c.l.b16 %v2556
    %v2610 = vunpack.c.l.b16 %v2557
    %v2611 = vunpack.c.l.b16 %v2558
    %v2612 = vunpack.c.l.b16 %v2559
    %v2613 = vunpack.c.l.b16 %v2560
    %v2614 = vunpack.c.l.b16 %v2561
    %v2615 = vunpack.c.l.b16 %v2562
    %v2616 = vunpack.c.l.b16 %v2563
    %v2617 = vunpack.c.l.b16 %v2564
    %v2618 = vunpack.c.l.b16 %v2565
    %v2619 = vunpack.c.l.b16 %v2566
    %v2620 = vunpack.c.l.b16 %v2567
    %v2621 = vunpack.c.l.b16 %v2568
    %v2622 = vunpack.c.l.b16 %v2569
    %v2623 = vunpack.c.l.b16 %v2570
    %v2624 = vunpack.c.l.b16 %v2571
    %v2625 = vunpack.c.l.b16 %v2572
    %v2626 = vunpack.c.l.b16 %v2573
    %v2627 = vunpack.c.l.b16 %v2574
    %v2628 = vunpack.c.l.b16 %v2575
    %v2629 = vpack.c.b16 %v2606, %v2605
    %v2630 = vpack.c.b16 %v2608, %v2607
    %v2631 = vpack.c.b16 %v2610, %v2609
    %v2632 = vpack.c.b16 %v2612, %v2611
    %v2633 = vpack.c.b16 %v2614, %v2613
    %v2634 = vpack.c.b16 %v2616, %v2615
    %v2635 = vpack.c.b16 %v2618, %v2617
    %v2636 = vpack.c.b16 %v2620, %v2619
    %v2637 = vpack.c.b16 %v2622, %v2621
    %v2638 = vpack.c.b16 %v2624, %v2623
    %v2639 = vpack.c.b16 %v2626, %v2625
    %v2640 = vpack.c.b16 %v2628, %v2627
    %v2654 = vsel %vm197, %v2551, 0
    %2656 = vmatprep.subr.bf16.mxu0 0
    %2657 = vmatpush1.bf16.msra.mxu0 %v2629
    %2658 = vmatprep.subr.bf16.mxu0 0
    %2659 = vmatpush1.bf16.msra.mxu0 %v2630
    %2660 = vmatprep.subr.bf16.mxu0 0
    %2661 = vmatpush1.bf16.msra.mxu0 %v2631
    %2662 = vmatprep.subr.bf16.mxu0 0
    %2663 = vmatpush1.bf16.msra.mxu0 %v2632
    %2664 = vmatprep.subr.bf16.mxu0 0
    %2665 = vmatpush1.bf16.msra.mxu0 %v2633
    %2666 = vmatprep.subr.bf16.mxu0 0
    %2667 = vmatpush1.bf16.msra.mxu0 %v2634
    %2668 = vmatprep.subr.bf16.mxu0 0
    %2669 = vmatpush1.bf16.msra.mxu0 %v2635
    %2670 = vmatprep.subr.bf16.mxu0 0
    %2671 = vmatpush1.bf16.msra.mxu0 %v2636
    %2672 = vmatprep.subr.bf16.mxu0 0
    %2673 = vmatpush1.bf16.msra.mxu0 %v2637
    %2674 = vmatprep.subr.bf16.mxu0 0
    %2675 = vmatpush1.bf16.msra.mxu0 %v2638
    %2676 = vmatprep.subr.bf16.mxu0 0
    %2677 = vmatpush1.bf16.msra.mxu0 %v2639
    %2678 = vmatprep.subr.bf16.mxu0 0
    %2679 = vmatpush1.bf16.msra.mxu0 %v2640
    %2680 = vmatprep.subr.bf16.mxu0 0
    %2681 = vmatpush1.bf16.msra.mxu0 0
    %2682 = vmatprep.subr.bf16.mxu0 0
    %2683 = vmatpush1.bf16.msra.mxu0 0
    %2684 = vmatprep.subr.bf16.mxu0 0
    %2685 = vmatpush1.bf16.msra.mxu0 0
    %2686 = vmatprep.subr.bf16.mxu0 0
    %2687 = vmatpush1.bf16.msra.mxu0 0
    %2688 = vmatprep.mubr.bf16.mxu0 %v2654
    %2689 = vmatmul.mubr.bf16.gmra.mrb[0].mxu0 %v2550
    %v2690 = vpop.f32.mrb[0].mxu0
    %v2691 = vadd.f32 %v2580, %v2690
    %v2692 = vpop.f32.mrb[0].mxu0
    %v2693 = vpop.f32.mrb[0].mxu0
    %v2694 = vpop.f32.mrb[0].mxu0
    %2695 = vdwg.mxu0
    %2696 = vst [vmem:[#allocation5] sm:$0x3] %v2691
    // Predicated region
    $region18: #{xvec_forward.1} parent=1 // pred_check
      _
    $region19: #{xvec_forward.1} parent=1 // pred_check_branch
      %2698 = sbr.rel (0) target = $region21
    $region20: #{xvec_forward.1} parent=1 // pred_region
      %s2700 = ssub.s32 32, 32
      %2701 = vsyncadd [#allocation4], %s2700
      %s2703 = sshll.u32 [#allocation5], 4
      %s2704 = int_to_ptr.vmem [resolvable:$true] %s2703
      %2706 = dma.vmem_to_hbm [thread:$0]  %s2704, 32, %s3, [#allocation4]
    $region21: #{xvec_forward.1} parent=1 // pred_fallthru
      _
    // Predicated region
    $region22: #{xvec_forward.1} parent=1 // pred_check
      _
    $region23: #{xvec_forward.1} parent=1 // pred_check_branch
      %2708 = sbr.rel (0) target = $region25
    $region24: #{xvec_forward.1} parent=1 // pred_region
      %2709 = dma.done [#allocation4], 32
    $region25: #{xvec_forward.1} parent=1 // pred_fallthru
      _
    %2710 = vsyncpa [#allocation3], 1
    %2711 = vsyncpa [#allocation4], 1

</llo_original>
